<compile_context>
chip_gen: v5e
topology: v5e:2x2
jax: 0.10.0
libtpu: 0.0.40
codegen_flags: <defaults>
</compile_context>

<pallas_src>
import functools
import numpy as np
import jax
import jax.numpy as jnp
from jax.experimental import pallas as pl
from jax.experimental.pallas import tpu as pltpu


# ----------------------------- Pallas kernel ------------------------------- #

def _fused_mha_kernel(x_ref, w_qkv_ref, cos_ref, sin_ref, w_o_ref, b_ref, o_ref,
                      *, n_heads):
    x = x_ref[...]                                        # (M, D) f32
    M, D = x.shape
    xb = x.astype(jnp.bfloat16)

    # One wide MXU push: [q, q@P, k, k@P, v] for every head at once.
    qkv = jnp.dot(xb, w_qkv_ref[...],
                  preferred_element_type=jnp.float32)     # (M, 5*H*D) f32

    c = cos_ref[...]                                      # (M, D) f32
    s = sin_ref[...]                                      # (M, D) f32 (signed)

    scale = jnp.float32(1.0 / np.sqrt(D))
    row = jax.lax.broadcasted_iota(jnp.int32, (M, M), 0)
    col = jax.lax.broadcasted_iota(jnp.int32, (M, M), 1)
    causal = col <= row
    neg_big = jnp.float32(-1e30)                          # finite: no NaN risk

    acc = jnp.zeros((M, D), jnp.float32)
    for h in range(n_heads):                              # static unroll, H small
        base = 5 * h * D
        q = qkv[:, base + 0 * D: base + 1 * D]
        qp = qkv[:, base + 1 * D: base + 2 * D]
        k = qkv[:, base + 2 * D: base + 3 * D]
        kp = qkv[:, base + 3 * D: base + 4 * D]
        v = qkv[:, base + 4 * D: base + 5 * D]

        # Exact RoPE (block-diagonal 2x2 rotations): q*cos + (q swapped)*sin.
        q_rot = (q * c + qp * s) * scale                  # 1/sqrt(d) folded in
        k_rot = k * c + kp * s

        scores = jax.lax.dot_general(
            q_rot.astype(jnp.bfloat16), k_rot.astype(jnp.bfloat16),
            (((1,), (1,)), ((), ())),
            preferred_element_type=jnp.float32)           # (M, M) f32
        scores = jnp.where(causal, scores, neg_big)
        scores = scores - jnp.max(scores, axis=-1, keepdims=True)
        p = jnp.exp(scores)
        p = p * pl.reciprocal(jnp.sum(p, axis=-1, keepdims=True), approx=True)

        head = jnp.dot(p.astype(jnp.bfloat16), v.astype(jnp.bfloat16),
                       preferred_element_type=jnp.float32)            # (M, D)
        # Fused output projection: accumulate this head's contribution.
        acc = acc + jnp.dot(head.astype(jnp.bfloat16),
                            w_o_ref[h * D:(h + 1) * D, :],
                            preferred_element_type=jnp.float32)

    o_ref[...] = acc + b_ref[...]                         # bias broadcast (1,D)


# ------------------------------ Wrapper ------------------------------------ #

def rope_masked_mha(x, wq, wk, wv, w_o, b_o, cos_m, sin_m, perm):
    """x: (B, M, D); wq/wk/wv: (H, D, D) pre-transposed so q = x @ wq[h];
    w_o: (H*D, D); b_o: (D,); perm: pair-swap index array of length D."""
    B, M, D = x.shape
    H = wq.shape[0]

    # Host-side weight fusion: fold the pair-swap permutation into the weights
    # ((x@W)@P == x@(W@P), and W@P is just a column permutation of W), and
    # concatenate q/qP/k/kP/v for all heads into one (D, 5*H*D) bf16 matrix.
    parts = []
    for h in range(H):
        parts += [wq[h], wq[h][:, perm], wk[h], wk[h][:, perm], wv[h]]
    w_qkv = jnp.concatenate(parts, axis=1).astype(jnp.bfloat16)   # (D, 5*H*D)
    w_o_bf = w_o.astype(jnp.bfloat16)                             # (H*D, D)

    kernel = functools.partial(_fused_mha_kernel, n_heads=H)

    out = pl.pallas_call(
        kernel,
        out_shape=jax.ShapeDtypeStruct((B, M, D), jnp.float32),
        grid_spec=pltpu.PrefetchScalarGridSpec(
            num_scalar_prefetch=0,
            grid=(B,),
            in_specs=[
                pl.BlockSpec((None, M, D), lambda b: (b, 0, 0)),      # x
                pl.BlockSpec((D, 5 * H * D), lambda b: (0, 0)),       # fused W
                pl.BlockSpec((M, D), lambda b: (0, 0)),               # cos
                pl.BlockSpec((M, D), lambda b: (0, 0)),               # sin (signed)
                pl.BlockSpec((H * D, D), lambda b: (0, 0)),           # w_o
                pl.BlockSpec((1, D), lambda b: (0, 0)),               # bias
            ],
            out_specs=pl.BlockSpec((None, M, D), lambda b: (b, 0, 0)),
        ),
        compiler_params=pltpu.CompilerParams(
            dimension_semantics=("parallel",)),
    )(x, w_qkv, cos_m, sin_m, w_o_bf, b_o.reshape(1, D))

    return out


# ------------------------- Rotary / parameter glue -------------------------- #

def rotary_cos_sin(m, d):
    """C[p,2i]=C[p,2i+1]=cos(p*theta_i); S[p,2i]=sin, S[p,2i+1]=-sin."""
    pos = np.arange(m, dtype=np.float64)[:, None]
    i = np.arange(d // 2, dtype=np.float64)[None, :]
    theta = 10000.0 ** (-2.0 * (i - 1) / d)   # (i-1): reproduces reference formula
    ang = pos * theta
    cos = np.cos(ang)
    sin = np.sin(ang)
    C = np.repeat(cos, 2, axis=1)
    S = np.stack([sin, -sin], axis=-1).reshape(m, d)
    return jnp.asarray(C, jnp.float32), jnp.asarray(S, jnp.float32)


def pair_swap_indices(d):
    return np.arange(d).reshape(-1, 2)[:, ::-1].reshape(-1)


def rotary_matrix_full(m, d):
    """Full R exactly as in the PyTorch get_rotary_matrix (reference check)."""
    R = np.zeros((m, d, d), dtype=np.float32)
    for p in range(m):
        for i in range(d // 2):
            theta = 10000.0 ** (-2.0 * (i - 1) / d)
            mt = p * theta
            R[p, 2 * i, 2 * i] = np.cos(mt)
            R[p, 2 * i, 2 * i + 1] = -np.sin(mt)
            R[p, 2 * i + 1, 2 * i] = np.sin(mt)
            R[p, 2 * i + 1, 2 * i + 1] = np.cos(mt)
    return jnp.asarray(R)


def reference_forward(x, wq, wk, wv, w_o, b_o, R):
    """Pure-JAX f32 eval-mode reference of RoPEMaskedMultiheadAttention."""
    B, M, D = x.shape
    outs = []
    for h in range(wq.shape[0]):
        q = x @ wq[h]
        k = x @ wk[h]
        v = x @ wv[h]
        q_rot = jnp.einsum('bmd,mde->bme', q, R)
        k_rot = jnp.einsum('bmd,mde->bme', k, R)
        scores = jnp.einsum('bqd,bkd->bqk', q_rot, k_rot) / jnp.sqrt(jnp.float32(D))
        mask = jnp.tril(jnp.ones((M, M), bool))
        scores = jnp.where(mask[None], scores, -jnp.inf)
        w = jax.nn.softmax(scores, axis=-1)
        outs.append(jnp.einsum('bqk,bkd->bqd', w, v))
    cat = jnp.concatenate(outs, axis=-1)
    return cat @ w_o + b_o


# --------------------------------- main ------------------------------------ #

if __name__ == "__main__":
    B, M, D, H = 2, 16, 128, 4   # batch, context_window (seq), d_model, n_heads

    key = jax.random.PRNGKey(0)
    kx, kq, kk, kv, ko, kb = jax.random.split(key, 6)

    x = jax.random.normal(kx, (B, M, D), jnp.float32)

    # per-head projection weights, stored as (D_in, D_out) (i.e. already W.T)
    wq = 0.02 * jax.random.normal(kq, (H, D, D), jnp.float32)
    wk = 0.02 * jax.random.normal(kk, (H, D, D), jnp.float32)
    wv = 0.02 * jax.random.normal(kv, (H, D, D), jnp.float32)
    # output projection: (H*D, D) plus bias (D,)
    w_o = 0.02 * jax.random.normal(ko, (H * D, D), jnp.float32)
    b_o = 0.02 * jax.random.normal(kb, (D,), jnp.float32)

    cos_m, sin_m = rotary_cos_sin(M, D)
    perm = pair_swap_indices(D)

    out = rope_masked_mha(x, wq, wk, wv, w_o, b_o, cos_m, sin_m, perm)
    out = jax.block_until_ready(out)

    # sanity check against a pure-JAX f32 reference (eval-mode, dropout = id).
    # Tolerance loosened vs the pure-f32 kernel because MXU inputs are bf16
    # (accumulation stays f32, so error growth is modest).
    R = rotary_matrix_full(M, D)
    ref = jax.block_until_ready(reference_forward(x, wq, wk, wv, w_o, b_o, R))
    assert out.shape == (B, M, D)
    np.testing.assert_allclose(np.asarray(out), np.asarray(ref),
                               rtol=2e-2, atol=2e-2)

    print("KERNEL_OK")
</pallas_src>

<mosaic_0001>
module attributes {stable_mosaic.version = 11 : i64} {
  func.func @_fused_mha_kernel(%arg0: i32, %arg1: memref<1x16x128xf32, #tpu.memory_space<vmem>>, %arg2: memref<128x2560xbf16, #tpu.memory_space<vmem>>, %arg3: memref<16x128xf32, #tpu.memory_space<vmem>>, %arg4: memref<16x128xf32, #tpu.memory_space<vmem>>, %arg5: memref<512x128xbf16, #tpu.memory_space<vmem>>, %arg6: memref<1x128xf32, #tpu.memory_space<vmem>>, %arg7: memref<1x16x128xf32, #tpu.memory_space<vmem>>) attributes {dimension_semantics = [#tpu.dimension_semantics<parallel>], iteration_bounds = array<i64: 2>, scalar_prefetch = 0 : i64, scratch_operands = 0 : i64, tpu.core_type = #tpu.core_type<tc>, window_params = [{transform_indices = @transform_0, window_bounds = array<i64: 1, 16, 128>}, {pipeline_mode = #tpu.pipeline_mode<synchronous>, transform_indices = @transform_1, window_bounds = array<i64: 128, 2560>}, {pipeline_mode = #tpu.pipeline_mode<synchronous>, transform_indices = @transform_2, window_bounds = array<i64: 16, 128>}, {pipeline_mode = #tpu.pipeline_mode<synchronous>, transform_indices = @transform_3, window_bounds = array<i64: 16, 128>}, {pipeline_mode = #tpu.pipeline_mode<synchronous>, transform_indices = @transform_4, window_bounds = array<i64: 512, 128>}, {pipeline_mode = #tpu.pipeline_mode<synchronous>, transform_indices = @transform_5, window_bounds = array<i64: 1, 128>}, {transform_indices = @transform_6, window_bounds = array<i64: 1, 16, 128>}]} {
    %c0 = arith.constant 0 : index
    %c0_0 = arith.constant 0 : index
    %c0_1 = arith.constant 0 : index
    %0 = vector.load %arg1[%c0, %c0_0, %c0_1] : memref<1x16x128xf32, #tpu.memory_space<vmem>>, vector<1x16x128xf32>
    %1 = vector.shape_cast %0 : vector<1x16x128xf32> to vector<16x128xf32>
    %2 = arith.truncf %1 : vector<16x128xf32> to vector<16x128xbf16>
    %c0_2 = arith.constant 0 : index
    %c0_3 = arith.constant 0 : index
    %3 = vector.load %arg2[%c0_2, %c0_3] : memref<128x2560xbf16, #tpu.memory_space<vmem>>, vector<128x2560xbf16>
    %cst = arith.constant dense<0.000000e+00> : vector<16x2560xf32>
    %4 = tpu.matmul %2, %3, %cst {dimension_numbers = #tpu.dot_dimension_numbers<[1], [0], [0], [1], [0, 0, 1, 1], [], []>} : vector<16x128xbf16>, vector<128x2560xbf16>, vector<16x2560xf32> -> vector<16x2560xf32>
    %c0_4 = arith.constant 0 : index
    %c0_5 = arith.constant 0 : index
    %5 = vector.load %arg3[%c0_4, %c0_5] : memref<16x128xf32, #tpu.memory_space<vmem>>, vector<16x128xf32>
    %c0_6 = arith.constant 0 : index
    %c0_7 = arith.constant 0 : index
    %6 = vector.load %arg4[%c0_6, %c0_7] : memref<16x128xf32, #tpu.memory_space<vmem>>, vector<16x128xf32>
    %7 = tpu.iota {dimensions = array<i32: 0>} : vector<16x16xi32>
    %8 = tpu.iota {dimensions = array<i32: 1>} : vector<16x16xi32>
    %9 = arith.cmpi sle, %8, %7 : vector<16x16xi32>
    %cst_8 = arith.constant 0.000000e+00 : f32
    %10 = vector.broadcast %cst_8 : f32 to vector<16x128xf32>
    %11 = vector.extract_strided_slice %4 {offsets = [0, 0], sizes = [16, 128], strides = [1, 1]} : vector<16x2560xf32> to vector<16x128xf32>
    %12 = vector.extract_strided_slice %4 {offsets = [0, 128], sizes = [16, 128], strides = [1, 1]} : vector<16x2560xf32> to vector<16x128xf32>
    %13 = vector.extract_strided_slice %4 {offsets = [0, 256], sizes = [16, 128], strides = [1, 1]} : vector<16x2560xf32> to vector<16x128xf32>
    %14 = vector.extract_strided_slice %4 {offsets = [0, 384], sizes = [16, 128], strides = [1, 1]} : vector<16x2560xf32> to vector<16x128xf32>
    %15 = vector.extract_strided_slice %4 {offsets = [0, 512], sizes = [16, 128], strides = [1, 1]} : vector<16x2560xf32> to vector<16x128xf32>
    %16 = arith.mulf %11, %5 : vector<16x128xf32>
    %17 = arith.mulf %12, %6 : vector<16x128xf32>
    %18 = arith.addf %16, %17 : vector<16x128xf32>
    %cst_9 = arith.constant 0.0883883461 : f32
    %19 = vector.broadcast %cst_9 : f32 to vector<16x128xf32>
    %20 = arith.mulf %18, %19 : vector<16x128xf32>
    %21 = arith.mulf %13, %5 : vector<16x128xf32>
    %22 = arith.mulf %14, %6 : vector<16x128xf32>
    %23 = arith.addf %21, %22 : vector<16x128xf32>
    %24 = arith.truncf %20 : vector<16x128xf32> to vector<16x128xbf16>
    %25 = arith.truncf %23 : vector<16x128xf32> to vector<16x128xbf16>
    %cst_10 = arith.constant dense<0.000000e+00> : vector<16x16xf32>
    %26 = tpu.matmul %24, %25, %cst_10 {dimension_numbers = #tpu.dot_dimension_numbers<[1], [1], [0], [0], [0, 0, 1, 0], [], []>} : vector<16x128xbf16>, vector<16x128xbf16>, vector<16x16xf32> -> vector<16x16xf32>
    %cst_11 = arith.constant -1.000000e+30 : f32
    %27 = vector.broadcast %cst_11 : f32 to vector<16x16xf32>
    %28 = arith.select %9, %26, %27 : vector<16x16xi1>, vector<16x16xf32>
    %cst_12 = arith.constant dense<0xFF800000> : vector<16xf32>
    %29 = vector.multi_reduction <maximumf>, %28, %cst_12 [1] : vector<16x16xf32> to vector<16xf32>
    %30 = vector.shape_cast %29 : vector<16xf32> to vector<16x1xf32>
    %31 = vector.broadcast %30 : vector<16x1xf32> to vector<16x16xf32>
    %32 = arith.subf %28, %31 : vector<16x16xf32>
    %33 = math.exp %32 : vector<16x16xf32>
    %cst_13 = arith.constant dense<0.000000e+00> : vector<16xf32>
    %34 = vector.multi_reduction <add>, %33, %cst_13 [1] : vector<16x16xf32> to vector<16xf32>
    %35 = vector.shape_cast %34 : vector<16xf32> to vector<16x1xf32>
    %36 = tpu.reciprocal %35 {approx = true} : vector<16x1xf32> -> vector<16x1xf32>
    %37 = vector.broadcast %36 : vector<16x1xf32> to vector<16x16xf32>
    %38 = arith.mulf %33, %37 : vector<16x16xf32>
    %39 = arith.truncf %38 : vector<16x16xf32> to vector<16x16xbf16>
    %40 = arith.truncf %15 : vector<16x128xf32> to vector<16x128xbf16>
    %cst_14 = arith.constant dense<0.000000e+00> : vector<16x128xf32>
    %41 = tpu.matmul %39, %40, %cst_14 {dimension_numbers = #tpu.dot_dimension_numbers<[1], [0], [0], [1], [0, 0, 1, 1], [], []>} : vector<16x16xbf16>, vector<16x128xbf16>, vector<16x128xf32> -> vector<16x128xf32>
    %42 = arith.truncf %41 : vector<16x128xf32> to vector<16x128xbf16>
    %c0_15 = arith.constant 0 : index
    %c0_16 = arith.constant 0 : index
    %43 = vector.load %arg5[%c0_15, %c0_16] : memref<512x128xbf16, #tpu.memory_space<vmem>>, vector<128x128xbf16>
    %cst_17 = arith.constant dense<0.000000e+00> : vector<16x128xf32>
    %44 = tpu.matmul %42, %43, %cst_17 {dimension_numbers = #tpu.dot_dimension_numbers<[1], [0], [0], [1], [0, 0, 1, 1], [], []>} : vector<16x128xbf16>, vector<128x128xbf16>, vector<16x128xf32> -> vector<16x128xf32>
    %45 = arith.addf %10, %44 : vector<16x128xf32>
    %46 = vector.extract_strided_slice %4 {offsets = [0, 640], sizes = [16, 128], strides = [1, 1]} : vector<16x2560xf32> to vector<16x128xf32>
    %47 = vector.extract_strided_slice %4 {offsets = [0, 768], sizes = [16, 128], strides = [1, 1]} : vector<16x2560xf32> to vector<16x128xf32>
    %48 = vector.extract_strided_slice %4 {offsets = [0, 896], sizes = [16, 128], strides = [1, 1]} : vector<16x2560xf32> to vector<16x128xf32>
    %49 = vector.extract_strided_slice %4 {offsets = [0, 1024], sizes = [16, 128], strides = [1, 1]} : vector<16x2560xf32> to vector<16x128xf32>
    %50 = vector.extract_strided_slice %4 {offsets = [0, 1152], sizes = [16, 128], strides = [1, 1]} : vector<16x2560xf32> to vector<16x128xf32>
    %51 = arith.mulf %46, %5 : vector<16x128xf32>
    %52 = arith.mulf %47, %6 : vector<16x128xf32>
    %53 = arith.addf %51, %52 : vector<16x128xf32>
    %cst_18 = arith.constant 0.0883883461 : f32
    %54 = vector.broadcast %cst_18 : f32 to vector<16x128xf32>
    %55 = arith.mulf %53, %54 : vector<16x128xf32>
    %56 = arith.mulf %48, %5 : vector<16x128xf32>
    %57 = arith.mulf %49, %6 : vector<16x128xf32>
    %58 = arith.addf %56, %57 : vector<16x128xf32>
    %59 = arith.truncf %55 : vector<16x128xf32> to vector<16x128xbf16>
    %60 = arith.truncf %58 : vector<16x128xf32> to vector<16x128xbf16>
    %cst_19 = arith.constant dense<0.000000e+00> : vector<16x16xf32>
    %61 = tpu.matmul %59, %60, %cst_19 {dimension_numbers = #tpu.dot_dimension_numbers<[1], [1], [0], [0], [0, 0, 1, 0], [], []>} : vector<16x128xbf16>, vector<16x128xbf16>, vector<16x16xf32> -> vector<16x16xf32>
    %cst_20 = arith.constant -1.000000e+30 : f32
    %62 = vector.broadcast %cst_20 : f32 to vector<16x16xf32>
    %63 = arith.select %9, %61, %62 : vector<16x16xi1>, vector<16x16xf32>
    %cst_21 = arith.constant dense<0xFF800000> : vector<16xf32>
    %64 = vector.multi_reduction <maximumf>, %63, %cst_21 [1] : vector<16x16xf32> to vector<16xf32>
    %65 = vector.shape_cast %64 : vector<16xf32> to vector<16x1xf32>
    %66 = vector.broadcast %65 : vector<16x1xf32> to vector<16x16xf32>
    %67 = arith.subf %63, %66 : vector<16x16xf32>
    %68 = math.exp %67 : vector<16x16xf32>
    %cst_22 = arith.constant dense<0.000000e+00> : vector<16xf32>
    %69 = vector.multi_reduction <add>, %68, %cst_22 [1] : vector<16x16xf32> to vector<16xf32>
    %70 = vector.shape_cast %69 : vector<16xf32> to vector<16x1xf32>
    %71 = tpu.reciprocal %70 {approx = true} : vector<16x1xf32> -> vector<16x1xf32>
    %72 = vector.broadcast %71 : vector<16x1xf32> to vector<16x16xf32>
    %73 = arith.mulf %68, %72 : vector<16x16xf32>
    %74 = arith.truncf %73 : vector<16x16xf32> to vector<16x16xbf16>
    %75 = arith.truncf %50 : vector<16x128xf32> to vector<16x128xbf16>
    %cst_23 = arith.constant dense<0.000000e+00> : vector<16x128xf32>
    %76 = tpu.matmul %74, %75, %cst_23 {dimension_numbers = #tpu.dot_dimension_numbers<[1], [0], [0], [1], [0, 0, 1, 1], [], []>} : vector<16x16xbf16>, vector<16x128xbf16>, vector<16x128xf32> -> vector<16x128xf32>
    %77 = arith.truncf %76 : vector<16x128xf32> to vector<16x128xbf16>
    %c128 = arith.constant 128 : index
    %c0_24 = arith.constant 0 : index
    %78 = vector.load %arg5[%c128, %c0_24] : memref<512x128xbf16, #tpu.memory_space<vmem>>, vector<128x128xbf16>
    %cst_25 = arith.constant dense<0.000000e+00> : vector<16x128xf32>
    %79 = tpu.matmul %77, %78, %cst_25 {dimension_numbers = #tpu.dot_dimension_numbers<[1], [0], [0], [1], [0, 0, 1, 1], [], []>} : vector<16x128xbf16>, vector<128x128xbf16>, vector<16x128xf32> -> vector<16x128xf32>
    %80 = arith.addf %45, %79 : vector<16x128xf32>
    %81 = vector.extract_strided_slice %4 {offsets = [0, 1280], sizes = [16, 128], strides = [1, 1]} : vector<16x2560xf32> to vector<16x128xf32>
    %82 = vector.extract_strided_slice %4 {offsets = [0, 1408], sizes = [16, 128], strides = [1, 1]} : vector<16x2560xf32> to vector<16x128xf32>
    %83 = vector.extract_strided_slice %4 {offsets = [0, 1536], sizes = [16, 128], strides = [1, 1]} : vector<16x2560xf32> to vector<16x128xf32>
    %84 = vector.extract_strided_slice %4 {offsets = [0, 1664], sizes = [16, 128], strides = [1, 1]} : vector<16x2560xf32> to vector<16x128xf32>
    %85 = vector.extract_strided_slice %4 {offsets = [0, 1792], sizes = [16, 128], strides = [1, 1]} : vector<16x2560xf32> to vector<16x128xf32>
    %86 = arith.mulf %81, %5 : vector<16x128xf32>
    %87 = arith.mulf %82, %6 : vector<16x128xf32>
    %88 = arith.addf %86, %87 : vector<16x128xf32>
    %cst_26 = arith.constant 0.0883883461 : f32
    %89 = vector.broadcast %cst_26 : f32 to vector<16x128xf32>
    %90 = arith.mulf %88, %89 : vector<16x128xf32>
    %91 = arith.mulf %83, %5 : vector<16x128xf32>
    %92 = arith.mulf %84, %6 : vector<16x128xf32>
    %93 = arith.addf %91, %92 : vector<16x128xf32>
    %94 = arith.truncf %90 : vector<16x128xf32> to vector<16x128xbf16>
    %95 = arith.truncf %93 : vector<16x128xf32> to vector<16x128xbf16>
    %cst_27 = arith.constant dense<0.000000e+00> : vector<16x16xf32>
    %96 = tpu.matmul %94, %95, %cst_27 {dimension_numbers = #tpu.dot_dimension_numbers<[1], [1], [0], [0], [0, 0, 1, 0], [], []>} : vector<16x128xbf16>, vector<16x128xbf16>, vector<16x16xf32> -> vector<16x16xf32>
    %cst_28 = arith.constant -1.000000e+30 : f32
    %97 = vector.broadcast %cst_28 : f32 to vector<16x16xf32>
    %98 = arith.select %9, %96, %97 : vector<16x16xi1>, vector<16x16xf32>
    %cst_29 = arith.constant dense<0xFF800000> : vector<16xf32>
    %99 = vector.multi_reduction <maximumf>, %98, %cst_29 [1] : vector<16x16xf32> to vector<16xf32>
    %100 = vector.shape_cast %99 : vector<16xf32> to vector<16x1xf32>
    %101 = vector.broadcast %100 : vector<16x1xf32> to vector<16x16xf32>
    %102 = arith.subf %98, %101 : vector<16x16xf32>
    %103 = math.exp %102 : vector<16x16xf32>
    %cst_30 = arith.constant dense<0.000000e+00> : vector<16xf32>
    %104 = vector.multi_reduction <add>, %103, %cst_30 [1] : vector<16x16xf32> to vector<16xf32>
    %105 = vector.shape_cast %104 : vector<16xf32> to vector<16x1xf32>
    %106 = tpu.reciprocal %105 {approx = true} : vector<16x1xf32> -> vector<16x1xf32>
    %107 = vector.broadcast %106 : vector<16x1xf32> to vector<16x16xf32>
    %108 = arith.mulf %103, %107 : vector<16x16xf32>
    %109 = arith.truncf %108 : vector<16x16xf32> to vector<16x16xbf16>
    %110 = arith.truncf %85 : vector<16x128xf32> to vector<16x128xbf16>
    %cst_31 = arith.constant dense<0.000000e+00> : vector<16x128xf32>
    %111 = tpu.matmul %109, %110, %cst_31 {dimension_numbers = #tpu.dot_dimension_numbers<[1], [0], [0], [1], [0, 0, 1, 1], [], []>} : vector<16x16xbf16>, vector<16x128xbf16>, vector<16x128xf32> -> vector<16x128xf32>
    %112 = arith.truncf %111 : vector<16x128xf32> to vector<16x128xbf16>
    %c256 = arith.constant 256 : index
    %c0_32 = arith.constant 0 : index
    %113 = vector.load %arg5[%c256, %c0_32] : memref<512x128xbf16, #tpu.memory_space<vmem>>, vector<128x128xbf16>
    %cst_33 = arith.constant dense<0.000000e+00> : vector<16x128xf32>
    %114 = tpu.matmul %112, %113, %cst_33 {dimension_numbers = #tpu.dot_dimension_numbers<[1], [0], [0], [1], [0, 0, 1, 1], [], []>} : vector<16x128xbf16>, vector<128x128xbf16>, vector<16x128xf32> -> vector<16x128xf32>
    %115 = arith.addf %80, %114 : vector<16x128xf32>
    %116 = vector.extract_strided_slice %4 {offsets = [0, 1920], sizes = [16, 128], strides = [1, 1]} : vector<16x2560xf32> to vector<16x128xf32>
    %117 = vector.extract_strided_slice %4 {offsets = [0, 2048], sizes = [16, 128], strides = [1, 1]} : vector<16x2560xf32> to vector<16x128xf32>
    %118 = vector.extract_strided_slice %4 {offsets = [0, 2176], sizes = [16, 128], strides = [1, 1]} : vector<16x2560xf32> to vector<16x128xf32>
    %119 = vector.extract_strided_slice %4 {offsets = [0, 2304], sizes = [16, 128], strides = [1, 1]} : vector<16x2560xf32> to vector<16x128xf32>
    %120 = vector.extract_strided_slice %4 {offsets = [0, 2432], sizes = [16, 128], strides = [1, 1]} : vector<16x2560xf32> to vector<16x128xf32>
    %121 = arith.mulf %116, %5 : vector<16x128xf32>
    %122 = arith.mulf %117, %6 : vector<16x128xf32>
    %123 = arith.addf %121, %122 : vector<16x128xf32>
    %cst_34 = arith.constant 0.0883883461 : f32
    %124 = vector.broadcast %cst_34 : f32 to vector<16x128xf32>
    %125 = arith.mulf %123, %124 : vector<16x128xf32>
    %126 = arith.mulf %118, %5 : vector<16x128xf32>
    %127 = arith.mulf %119, %6 : vector<16x128xf32>
    %128 = arith.addf %126, %127 : vector<16x128xf32>
    %129 = arith.truncf %125 : vector<16x128xf32> to vector<16x128xbf16>
    %130 = arith.truncf %128 : vector<16x128xf32> to vector<16x128xbf16>
    %cst_35 = arith.constant dense<0.000000e+00> : vector<16x16xf32>
    %131 = tpu.matmul %129, %130, %cst_35 {dimension_numbers = #tpu.dot_dimension_numbers<[1], [1], [0], [0], [0, 0, 1, 0], [], []>} : vector<16x128xbf16>, vector<16x128xbf16>, vector<16x16xf32> -> vector<16x16xf32>
    %cst_36 = arith.constant -1.000000e+30 : f32
    %132 = vector.broadcast %cst_36 : f32 to vector<16x16xf32>
    %133 = arith.select %9, %131, %132 : vector<16x16xi1>, vector<16x16xf32>
    %cst_37 = arith.constant dense<0xFF800000> : vector<16xf32>
    %134 = vector.multi_reduction <maximumf>, %133, %cst_37 [1] : vector<16x16xf32> to vector<16xf32>
    %135 = vector.shape_cast %134 : vector<16xf32> to vector<16x1xf32>
    %136 = vector.broadcast %135 : vector<16x1xf32> to vector<16x16xf32>
    %137 = arith.subf %133, %136 : vector<16x16xf32>
    %138 = math.exp %137 : vector<16x16xf32>
    %cst_38 = arith.constant dense<0.000000e+00> : vector<16xf32>
    %139 = vector.multi_reduction <add>, %138, %cst_38 [1] : vector<16x16xf32> to vector<16xf32>
    %140 = vector.shape_cast %139 : vector<16xf32> to vector<16x1xf32>
    %141 = tpu.reciprocal %140 {approx = true} : vector<16x1xf32> -> vector<16x1xf32>
    %142 = vector.broadcast %141 : vector<16x1xf32> to vector<16x16xf32>
    %143 = arith.mulf %138, %142 : vector<16x16xf32>
    %144 = arith.truncf %143 : vector<16x16xf32> to vector<16x16xbf16>
    %145 = arith.truncf %120 : vector<16x128xf32> to vector<16x128xbf16>
    %cst_39 = arith.constant dense<0.000000e+00> : vector<16x128xf32>
    %146 = tpu.matmul %144, %145, %cst_39 {dimension_numbers = #tpu.dot_dimension_numbers<[1], [0], [0], [1], [0, 0, 1, 1], [], []>} : vector<16x16xbf16>, vector<16x128xbf16>, vector<16x128xf32> -> vector<16x128xf32>
    %147 = arith.truncf %146 : vector<16x128xf32> to vector<16x128xbf16>
    %c384 = arith.constant 384 : index
    %c0_40 = arith.constant 0 : index
    %148 = vector.load %arg5[%c384, %c0_40] : memref<512x128xbf16, #tpu.memory_space<vmem>>, vector<128x128xbf16>
    %cst_41 = arith.constant dense<0.000000e+00> : vector<16x128xf32>
    %149 = tpu.matmul %147, %148, %cst_41 {dimension_numbers = #tpu.dot_dimension_numbers<[1], [0], [0], [1], [0, 0, 1, 1], [], []>} : vector<16x128xbf16>, vector<128x128xbf16>, vector<16x128xf32> -> vector<16x128xf32>
    %150 = arith.addf %115, %149 : vector<16x128xf32>
    %c0_42 = arith.constant 0 : index
    %c0_43 = arith.constant 0 : index
    %151 = vector.load %arg6[%c0_42, %c0_43] : memref<1x128xf32, #tpu.memory_space<vmem>>, vector<1x128xf32>
    %152 = vector.broadcast %151 : vector<1x128xf32> to vector<16x128xf32>
    %153 = arith.addf %150, %152 : vector<16x128xf32>
    %c0_44 = arith.constant 0 : index
    %c0_45 = arith.constant 0 : index
    %c0_46 = arith.constant 0 : index
    %154 = vector.load %arg7[%c0_44, %c0_45, %c0_46] : memref<1x16x128xf32, #tpu.memory_space<vmem>>, vector<1x16x128xf32>
    %155 = vector.shape_cast %154 : vector<1x16x128xf32> to vector<16x128xf32>
    %156 = vector.shape_cast %153 : vector<16x128xf32> to vector<1x16x128xf32>
    tpu.vector_store %arg7[%c0_44, %c0_45, %c0_46], %156 {strides = array<i32>} : memref<1x16x128xf32, #tpu.memory_space<vmem>>, vector<1x16x128xf32>,
    return
  }
  func.func @transform_0(%arg0: i32) -> (i32, i32, i32) {
    %c0_i32 = arith.constant 0 : i32
    %c0_i32_0 = arith.constant 0 : i32
    %c0_i32_1 = arith.constant 0 : i32
    return %arg0, %c0_i32, %c0_i32_0 : i32, i32, i32
  }
  func.func @transform_1(%arg0: i32) -> (i32, i32) {
    %c0_i32 = arith.constant 0 : i32
    %c0_i32_0 = arith.constant 0 : i32
    %c0_i32_1 = arith.constant 0 : i32
    return %c0_i32, %c0_i32_0 : i32, i32
  }
  func.func @transform_2(%arg0: i32) -> (i32, i32) {
    %c0_i32 = arith.constant 0 : i32
    %c0_i32_0 = arith.constant 0 : i32
    %c0_i32_1 = arith.constant 0 : i32
    return %c0_i32, %c0_i32_0 : i32, i32
  }
  func.func @transform_3(%arg0: i32) -> (i32, i32) {
    %c0_i32 = arith.constant 0 : i32
    %c0_i32_0 = arith.constant 0 : i32
    %c0_i32_1 = arith.constant 0 : i32
    return %c0_i32, %c0_i32_0 : i32, i32
  }
  func.func @transform_4(%arg0: i32) -> (i32, i32) {
    %c0_i32 = arith.constant 0 : i32
    %c0_i32_0 = arith.constant 0 : i32
    %c0_i32_1 = arith.constant 0 : i32
    return %c0_i32, %c0_i32_0 : i32, i32
  }
  func.func @transform_5(%arg0: i32) -> (i32, i32) {
    %c0_i32 = arith.constant 0 : i32
    %c0_i32_0 = arith.constant 0 : i32
    %c0_i32_1 = arith.constant 0 : i32
    return %c0_i32, %c0_i32_0 : i32, i32
  }
  func.func @transform_6(%arg0: i32) -> (i32, i32, i32) {
    %c0_i32 = arith.constant 0 : i32
    %c0_i32_0 = arith.constant 0 : i32
    %c0_i32_1 = arith.constant 0 : i32
    return %arg0, %c0_i32, %c0_i32_0 : i32, i32, i32
  }
}

</mosaic_0001>

<llo_original>
// kernel: tpu_custom_call.1
$region0: #{tpu_custom_call.1}
  #allocation0 [shape = 'u32[]', space=smem, size = 0x4, offset = 0x4, fixed_abs, tag = 'smem constant byte address 0x4 - core index']
  #allocation1 [shape = 'u32[72,128]{1,0:T(1,128)}', space=vmem, size = 0x9000, scoped, tag = 'internal scratch']
  %s0 = inlined_call_operand.hbm [shape: f32[2,16,128], index: 0, kind: input, shape index: {}]
  %s1 = inlined_call_operand.hbm [shape: bf16[128,2560], index: 1, kind: input, shape index: {}]
  %s2 = inlined_call_operand.hbm [shape: f32[16,128], index: 2, kind: input, shape index: {}]
  %s3 = inlined_call_operand.hbm [shape: f32[16,128], index: 3, kind: input, shape index: {}]
  %s4 = inlined_call_operand.hbm [shape: bf16[512,128], index: 4, kind: input, shape index: {}]
  %s5 = inlined_call_operand.vmem [shape: f32[1,128], index: 5, kind: input, shape index: {}]
  %s6 = inlined_call_operand.hbm [shape: f32[2,16,128], index: 6, kind: output, shape index: {}]
  %s7 = sld [smem:[#allocation0]]
  $region77: #{tpu_custom_call.1} parent=0
    _
  %s9 = ssub.s32 1, %s7
  %s10 = scalar_select 0, %s9, %s7
  $region1: #{tpu_custom_call.1} parent=0
    #allocation2 [shape = 'u8[16384]{0}', space=vmem, size = 0x4000, scoped, tag = 'input window, operand 0']
    #allocation3 [shape = 's32[2]{0}', space=sflag, size = 0x8, scoped, tag = 'scoped memory for tpu_custom_call.1']
    #allocation4 [shape = 's32[2]{0}', space=sflag, size = 0x8, scoped, tag = 'scoped memory for tpu_custom_call.1']
    #allocation5 [shape = 'u8[655360]{0}', space=vmem, size = 0xa0000, scoped, tag = 'input window, operand 1, single buffered']
    #allocation6 [shape = 's32[1]{0}', space=sflag, size = 0x4, scoped, tag = 'scoped memory for tpu_custom_call.1']
    #allocation7 [shape = 'u8[8192]{0}', space=vmem, size = 0x2000, scoped, tag = 'input window, operand 2, single buffered']
    #allocation8 [shape = 'u8[8192]{0}', space=vmem, size = 0x2000, scoped, tag = 'input window, operand 3, single buffered']
    #allocation9 [shape = 's32[1]{0}', space=sflag, size = 0x4, scoped, tag = 'scoped memory for tpu_custom_call.1']
    #allocation10 [shape = 'u8[131072]{0}', space=vmem, size = 0x20000, scoped, tag = 'input window, operand 4, single buffered']
    #allocation11 [shape = 'u8[16384]{0}', space=vmem, size = 0x4000, scoped, tag = 'output window, operand 0']
    %11 = vsyncpa [#allocation3], 0
    %s12 = scalar_lea.sflag [#allocation3], 1
    %13 = vsyncpa %s12, 0
    %14 = vsyncpa [#allocation6], 0
    %15 = vsyncpa [#allocation9], 0
    %16 = vsyncpa [#allocation4], 0
    %s17 = scalar_lea.sflag [#allocation4], 1
    %18 = vsyncpa %s17, 0
    loop: start=0, step=1, limit=4
    $region2: #{tpu_custom_call.1} parent=1 // loop_pre_header
      _
    $region3: #{tpu_custom_call.1} parent=1 // loop_header
      %s20 = sphi 0, %s24
      %p21 = scmp.ge.s32.totalorder %s20, 4
      %s30 = sphi 0, %s32
      %s33 = sphi 0, %s30
      %s34 = sphi 0, %s33
      %s50 = sphi 0, %s34
      %s54 = sphi 0, %s54
      %s56 = sphi 0, %s54
      %s57 = sphi 0, %s56
      %s71 = sphi 0, %s57
      %s75 = sphi 0, %s75
      %s77 = sphi 0, %s75
      %s78 = sphi 0, %s77
      %s92 = sphi 0, %s78
      %s96 = sphi 0, %s96
      %s98 = sphi 0, %s96
      %s99 = sphi 0, %s98
      %s113 = sphi 0, %s99
      %s117 = sphi 0, %s117
      %s119 = sphi 0, %s117
      %s120 = sphi 0, %s119
      %s134 = sphi 0, %s120
      %s138 = sphi 0, %s138
      %s140 = sphi 0, %s138
      %s141 = sphi 0, %s140
      %s155 = sphi 0, %s141
      %s161 = sphi 0, %s163
      %s164 = sphi 0, %s161
      %s165 = sphi 0, %s164
      %s181 = sphi 0, %s165
    $region4: #{tpu_custom_call.1} parent=1 // loop_header_branch
      %23 = sbr.rel (%p21) target = $region8
    $region5: #{tpu_custom_call.1} parent=1 // loop_body
      %s25 = ssub.s32 %s20, 1
      %s26 = ssub.s32 %s20, 2
      %s27 = sadd.s32 %s20, 1
      %s28 = ssub.s32 %s20, %s27
      %p29 = scmp.eq.s32.totalorder %s28, 0
      %s31 = sadd.s32 %s30, 1
      %s32 = scalar_select %p29, %s30, %s31
      %p35 = pneg %p29
      %p36 = scmp.eq.s32.totalorder %s20, 1
      %p37 = por %p35, %p36
      %p38 = scmp.ne.s32.totalorder %s30, %s33
      %p39 = scmp.eq.s32.totalorder %s20, 0
      %p40 = por %p38, %p39
      %p41 = scmp.ne.s32.totalorder %s30, %s33
      %p42 = scmp.eq.s32.totalorder %s25, 1
      %p43 = por %p41, %p42
      %p44 = scmp.ne.s32.totalorder %s33, %s34
      %p45 = scmp.eq.s32.totalorder %s25, 0
      %p46 = por %p44, %p45
      %p47 = scmp.ne.s32.totalorder %s33, %s34
      %p48 = scmp.eq.s32.totalorder %s26, 1
      %p49 = por %p47, %p48
      %p51 = scmp.ne.s32.totalorder %s34, %s50
      %p52 = scmp.eq.s32.totalorder %s26, 0
      %p53 = por %p51, %p52
      %s55 = sadd.s32 %s54, 1
      %p58 = scmp.eq.s32.totalorder %s20, 1
      %p59 = scmp.ne.s32.totalorder %s54, %s56
      %p60 = scmp.eq.s32.totalorder %s20, 0
      %p61 = por %p59, %p60
      %p62 = scmp.ne.s32.totalorder %s54, %s56
      %p63 = scmp.eq.s32.totalorder %s25, 1
      %p64 = por %p62, %p63
      %p65 = scmp.ne.s32.totalorder %s56, %s57
      %p66 = scmp.eq.s32.totalorder %s25, 0
      %p67 = por %p65, %p66
      %p68 = scmp.ne.s32.totalorder %s56, %s57
      %p69 = scmp.eq.s32.totalorder %s26, 1
      %p70 = por %p68, %p69
      %p72 = scmp.ne.s32.totalorder %s57, %s71
      %p73 = scmp.eq.s32.totalorder %s26, 0
      %p74 = por %p72, %p73
      %s76 = sadd.s32 %s75, 1
      %p79 = scmp.eq.s32.totalorder %s20, 1
      %p80 = scmp.ne.s32.totalorder %s75, %s77
      %p81 = scmp.eq.s32.totalorder %s20, 0
      %p82 = por %p80, %p81
      %p83 = scmp.ne.s32.totalorder %s75, %s77
      %p84 = scmp.eq.s32.totalorder %s25, 1
      %p85 = por %p83, %p84
      %p86 = scmp.ne.s32.totalorder %s77, %s78
      %p87 = scmp.eq.s32.totalorder %s25, 0
      %p88 = por %p86, %p87
      %p89 = scmp.ne.s32.totalorder %s77, %s78
      %p90 = scmp.eq.s32.totalorder %s26, 1
      %p91 = por %p89, %p90
      %p93 = scmp.ne.s32.totalorder %s78, %s92
      %p94 = scmp.eq.s32.totalorder %s26, 0
      %p95 = por %p93, %p94
      %s97 = sadd.s32 %s96, 1
      %p100 = scmp.eq.s32.totalorder %s20, 1
      %p101 = scmp.ne.s32.totalorder %s96, %s98
      %p102 = scmp.eq.s32.totalorder %s20, 0
      %p103 = por %p101, %p102
      %p104 = scmp.ne.s32.totalorder %s96, %s98
      %p105 = scmp.eq.s32.totalorder %s25, 1
      %p106 = por %p104, %p105
      %p107 = scmp.ne.s32.totalorder %s98, %s99
      %p108 = scmp.eq.s32.totalorder %s25, 0
      %p109 = por %p107, %p108
      %p110 = scmp.ne.s32.totalorder %s98, %s99
      %p111 = scmp.eq.s32.totalorder %s26, 1
      %p112 = por %p110, %p111
      %p114 = scmp.ne.s32.totalorder %s99, %s113
      %p115 = scmp.eq.s32.totalorder %s26, 0
      %p116 = por %p114, %p115
      %s118 = sadd.s32 %s117, 1
      %p121 = scmp.eq.s32.totalorder %s20, 1
      %p122 = scmp.ne.s32.totalorder %s117, %s119
      %p123 = scmp.eq.s32.totalorder %s20, 0
      %p124 = por %p122, %p123
      %p125 = scmp.ne.s32.totalorder %s117, %s119
      %p126 = scmp.eq.s32.totalorder %s25, 1
      %p127 = por %p125, %p126
      %p128 = scmp.ne.s32.totalorder %s119, %s120
      %p129 = scmp.eq.s32.totalorder %s25, 0
      %p130 = por %p128, %p129
      %p131 = scmp.ne.s32.totalorder %s119, %s120
      %p132 = scmp.eq.s32.totalorder %s26, 1
      %p133 = por %p131, %p132
      %p135 = scmp.ne.s32.totalorder %s120, %s134
      %p136 = scmp.eq.s32.totalorder %s26, 0
      %p137 = por %p135, %p136
      %s139 = sadd.s32 %s138, 1
      %p142 = scmp.eq.s32.totalorder %s20, 1
      %p143 = scmp.ne.s32.totalorder %s138, %s140
      %p144 = scmp.eq.s32.totalorder %s20, 0
      %p145 = por %p143, %p144
      %p146 = scmp.ne.s32.totalorder %s138, %s140
      %p147 = scmp.eq.s32.totalorder %s25, 1
      %p148 = por %p146, %p147
      %p149 = scmp.ne.s32.totalorder %s140, %s141
      %p150 = scmp.eq.s32.totalorder %s25, 0
      %p151 = por %p149, %p150
      %p152 = scmp.ne.s32.totalorder %s140, %s141
      %p153 = scmp.eq.s32.totalorder %s26, 1
      %p154 = por %p152, %p153
      %p156 = scmp.ne.s32.totalorder %s141, %s155
      %p157 = scmp.eq.s32.totalorder %s26, 0
      %p158 = por %p156, %p157
      %s159 = ssub.s32 %s20, %s27
      %p160 = scmp.eq.s32.totalorder %s159, 0
      %s162 = sadd.s32 %s161, 1
      %s163 = scalar_select %p160, %s161, %s162
      %p166 = pneg %p160
      %p167 = scmp.eq.s32.totalorder %s20, 1
      %p168 = por %p166, %p167
      %p169 = scmp.ne.s32.totalorder %s161, %s164
      %p170 = scmp.eq.s32.totalorder %s20, 0
      %p171 = por %p169, %p170
      %p172 = scmp.ne.s32.totalorder %s161, %s164
      %p173 = scmp.eq.s32.totalorder %s25, 1
      %p174 = por %p172, %p173
      %p175 = scmp.ne.s32.totalorder %s164, %s165
      %p176 = scmp.eq.s32.totalorder %s25, 0
      %p177 = por %p175, %p176
      %p178 = scmp.ne.s32.totalorder %s164, %s165
      %p179 = scmp.eq.s32.totalorder %s26, 1
      %p180 = por %p178, %p179
      %p182 = scmp.ne.s32.totalorder %s165, %s181
      %p183 = scmp.eq.s32.totalorder %s26, 0
      %p184 = por %p182, %p183
      %p185 = scmp.le.s32.totalorder 1, %s20
      %p186 = scmp.lt.s32.totalorder %s20, 3
      %p187 = pnand %p185, %p186
      %p188 = pneg %p187
      // Predicated region
      $region9: #{tpu_custom_call.1} parent=5 // pred_check
        _
      $region10: #{tpu_custom_call.1} parent=5 // pred_check_branch
        %190 = sbr.rel (%p187) target = $region12
      $region11: #{tpu_custom_call.1} parent=5 // pred_region
        %s191 = ssub.s32 %s20, 1
        // Predicated region
        $region13: #{tpu_custom_call.1} parent=11 // pred_check
          %p192 = pneg %p67
        $region14: #{tpu_custom_call.1} parent=11 // pred_check_branch
          %194 = sbr.rel (%p192) target = $region16
        $region15: #{tpu_custom_call.1} parent=11 // pred_region
          %196 = vsyncadd [#allocation6], 0
          %s197 = sshll.u32 %s1, 4
          %s198 = int_to_ptr.hbm [resolvable:$true] %s197
          %s199 = sshll.u32 [#allocation5], 4
          %s200 = int_to_ptr.vmem [resolvable:$true] %s199
          %205 = dma.hbm_to_vmem [thread:$0]  %s198, 20480, %s200, [#allocation6], 1280, 1280, 80
        $region16: #{tpu_custom_call.1} parent=11 // pred_fallthru
          _
        // Predicated region
        $region17: #{tpu_custom_call.1} parent=11 // pred_check
          %p206 = pneg %p88
        $region18: #{tpu_custom_call.1} parent=11 // pred_check_branch
          %208 = sbr.rel (%p206) target = $region20
        $region19: #{tpu_custom_call.1} parent=11 // pred_region
          %210 = vsyncadd [#allocation6], 0
          %s211 = sshll.u32 %s2, 4
          %s212 = int_to_ptr.hbm [resolvable:$true] %s211
          %s213 = sshll.u32 [#allocation7], 4
          %s214 = int_to_ptr.vmem [resolvable:$true] %s213
          %219 = dma.hbm_to_vmem [thread:$0]  %s212, 256, %s214, [#allocation6], 128, 128, 8
        $region20: #{tpu_custom_call.1} parent=11 // pred_fallthru
          _
        // Predicated region
        $region21: #{tpu_custom_call.1} parent=11 // pred_check
          %p220 = pneg %p109
        $region22: #{tpu_custom_call.1} parent=11 // pred_check_branch
          %222 = sbr.rel (%p220) target = $region24
        $region23: #{tpu_custom_call.1} parent=11 // pred_region
          %224 = vsyncadd [#allocation9], 0
          %s225 = sshll.u32 %s3, 4
          %s226 = int_to_ptr.hbm [resolvable:$true] %s225
          %s227 = sshll.u32 [#allocation8], 4
          %s228 = int_to_ptr.vmem [resolvable:$true] %s227
          %233 = dma.hbm_to_vmem [thread:$0]  %s226, 256, %s228, [#allocation9], 128, 128, 8
        $region24: #{tpu_custom_call.1} parent=11 // pred_fallthru
          _
        // Predicated region
        $region25: #{tpu_custom_call.1} parent=11 // pred_check
          %p234 = pneg %p130
        $region26: #{tpu_custom_call.1} parent=11 // pred_check_branch
          %236 = sbr.rel (%p234) target = $region28
        $region27: #{tpu_custom_call.1} parent=11 // pred_region
          %238 = vsyncadd [#allocation9], 0
          %s239 = sshll.u32 %s4, 4
          %s240 = int_to_ptr.hbm [resolvable:$true] %s239
          %s241 = sshll.u32 [#allocation10], 4
          %s242 = int_to_ptr.vmem [resolvable:$true] %s241
          %247 = dma.hbm_to_vmem [thread:$0]  %s240, 4096, %s242, [#allocation9], 64, 64, 4
        $region28: #{tpu_custom_call.1} parent=11 // pred_fallthru
          _
        // Predicated region
        $region29: #{tpu_custom_call.1} parent=11 // pred_check
          %p248 = pneg %p151
        $region30: #{tpu_custom_call.1} parent=11 // pred_check_branch
          %250 = sbr.rel (%p248) target = $region32
        $region31: #{tpu_custom_call.1} parent=11 // pred_region
          _
        $region32: #{tpu_custom_call.1} parent=11 // pred_fallthru
          _
      $region12: #{tpu_custom_call.1} parent=5 // pred_fallthru
        _
      %p251 = scmp.lt.s32.totalorder %s20, 2
      // Predicated region
      $region33: #{tpu_custom_call.1} parent=5 // pred_check
        %p252 = pneg %p251
      $region34: #{tpu_custom_call.1} parent=5 // pred_check_branch
        %254 = sbr.rel (%p252) target = $region36
      $region35: #{tpu_custom_call.1} parent=5 // pred_region
        // Predicated region
        $region37: #{tpu_custom_call.1} parent=35 // pred_check
          %p255 = pneg %p40
        $region38: #{tpu_custom_call.1} parent=35 // pred_check_branch
          %257 = sbr.rel (%p255) target = $region40
        $region39: #{tpu_custom_call.1} parent=35 // pred_region
          %s258 = sand.u32 %s30, 1
          %s259 = scalar_lea.sflag [#allocation3], %s258
          %s260 = sand.u32 %s30, 1
          %s261 = smul.addr %s260, 16
          %s262 = scalar_lea.vmem [#allocation2], %s261
          %264 = vsyncadd %s259, 0
          %s265 = smul.addr %s20, 2
          %s266 = smul.addr %s265, 8
          %s267 = scalar_lea.hbm %s0, %s266
          %s268 = sshll.u32 %s267, 4
          %s269 = int_to_ptr.hbm [resolvable:$true] %s268
          %s270 = sshll.u32 %s262, 4
          %s271 = int_to_ptr.vmem [resolvable:$true] %s270
          %276 = dma.hbm_to_vmem [thread:$0]  %s269, 256, %s271, %s259, 128, 128, 8
        $region40: #{tpu_custom_call.1} parent=35 // pred_fallthru
          _
      $region36: #{tpu_custom_call.1} parent=5 // pred_fallthru
        _
      %p277 = scmp.le.s32.totalorder 1, %s20
      %p278 = scmp.lt.s32.totalorder %s20, 3
      %p279 = pnand %p277, %p278
      %p280 = pneg %p279
      // Predicated region
      $region41: #{tpu_custom_call.1} parent=5 // pred_check
        _
      $region42: #{tpu_custom_call.1} parent=5 // pred_check_branch
        %282 = sbr.rel (%p279) target = $region44
      $region43: #{tpu_custom_call.1} parent=5 // pred_region
        %s283 = ssub.s32 %s20, 1
        %s284 = sand.u32 %s33, 1
        %s285 = scalar_lea.sflag [#allocation3], %s284
        %s286 = sand.u32 %s33, 1
        %s287 = smul.addr %s286, 16
        %s288 = scalar_lea.vmem [#allocation2], %s287
        // Predicated region
        $region45: #{tpu_custom_call.1} parent=43 // pred_check
          %p289 = pneg %p46
        $region46: #{tpu_custom_call.1} parent=43 // pred_check_branch
          %291 = sbr.rel (%p289) target = $region48
        $region47: #{tpu_custom_call.1} parent=43 // pred_region
          %293 = dma.done %s285, 256
        $region48: #{tpu_custom_call.1} parent=43 // pred_fallthru
          _
        // Predicated region
        $region49: #{tpu_custom_call.1} parent=43 // pred_check
          %p294 = pneg %p67
        $region50: #{tpu_custom_call.1} parent=43 // pred_check_branch
          %296 = sbr.rel (%p294) target = $region52
        $region51: #{tpu_custom_call.1} parent=43 // pred_region
          %298 = dma.done [#allocation6], 20480
        $region52: #{tpu_custom_call.1} parent=43 // pred_fallthru
          _
        // Predicated region
        $region53: #{tpu_custom_call.1} parent=43 // pred_check
          %p299 = pneg %p88
        $region54: #{tpu_custom_call.1} parent=43 // pred_check_branch
          %301 = sbr.rel (%p299) target = $region56
        $region55: #{tpu_custom_call.1} parent=43 // pred_region
          %303 = dma.done [#allocation6], 256
        $region56: #{tpu_custom_call.1} parent=43 // pred_fallthru
          _
        // Predicated region
        $region57: #{tpu_custom_call.1} parent=43 // pred_check
          %p304 = pneg %p109
        $region58: #{tpu_custom_call.1} parent=43 // pred_check_branch
          %306 = sbr.rel (%p304) target = $region60
        $region59: #{tpu_custom_call.1} parent=43 // pred_region
          %308 = dma.done [#allocation9], 256
        $region60: #{tpu_custom_call.1} parent=43 // pred_fallthru
          _
        // Predicated region
        $region61: #{tpu_custom_call.1} parent=43 // pred_check
          %p309 = pneg %p130
        $region62: #{tpu_custom_call.1} parent=43 // pred_check_branch
          %311 = sbr.rel (%p309) target = $region64
        $region63: #{tpu_custom_call.1} parent=43 // pred_region
          %313 = dma.done [#allocation9], 4096
        $region64: #{tpu_custom_call.1} parent=43 // pred_fallthru
          _
        %s314 = sand.u32 %s33, 1
        %s315 = scalar_lea.sflag [#allocation3], %s314
        %s316 = sand.u32 %s33, 1
        %s317 = smul.addr %s316, 16
        %s318 = scalar_lea.vmem [#allocation2], %s317
        %p319 = pneg %p46
        %p320 = pneg %p43
        %p321 = pneg %p67
        %p322 = pneg %p64
        %p323 = pneg %p88
        %p324 = pneg %p85
        %p325 = pneg %p109
        %p326 = pneg %p106
        %p327 = pneg %p130
        %p328 = pneg %p127
        %p329 = pneg %p151
        %p330 = pneg %p148
        %p331 = pneg %p177
        %p332 = pneg %p174
        %s333 = sand.u32 %s164, 1
        %s334 = scalar_lea.sflag [#allocation4], %s333
        %s335 = sand.u32 %s164, 1
        %s336 = smul.addr %s335, 16
        %s337 = scalar_lea.vmem [#allocation11], %s336
        %v339 = vld [vmem:[%s288] sm:$0xff]
        %v340 = vld [vmem:[%s288 + $0x8] sm:$0xff]
        %v341 = vpack.c.bf16 %v340, %v339
        %v342 = vld [vmem:[#allocation5] sm:$0xff]
        %v343 = vld [vmem:[#allocation5 + $0x8] sm:$0xff]
        %v344 = vld [vmem:[#allocation5 + $0x10] sm:$0xff]
        %v345 = vld [vmem:[#allocation5 + $0x18] sm:$0xff]
        %v346 = vld [vmem:[#allocation5 + $0x20] sm:$0xff]
        %v347 = vld [vmem:[#allocation5 + $0x28] sm:$0xff]
        %v348 = vld [vmem:[#allocation5 + $0x30] sm:$0xff]
        %v349 = vld [vmem:[#allocation5 + $0x38] sm:$0xff]
        %v350 = vld [vmem:[#allocation5 + $0x40] sm:$0xff]
        %v351 = vld [vmem:[#allocation5 + $0x48] sm:$0xff]
        %v352 = vld [vmem:[#allocation5 + $0x50] sm:$0xff]
        %v353 = vld [vmem:[#allocation5 + $0x58] sm:$0xff]
        %v354 = vld [vmem:[#allocation5 + $0x60] sm:$0xff]
        %v355 = vld [vmem:[#allocation5 + $0x68] sm:$0xff]
        %v356 = vld [vmem:[#allocation5 + $0x70] sm:$0xff]
        %v357 = vld [vmem:[#allocation5 + $0x78] sm:$0xff]
        %v358 = vld [vmem:[#allocation5 + $0x80] sm:$0xff]
        %v359 = vld [vmem:[#allocation5 + $0x88] sm:$0xff]
        %v360 = vld [vmem:[#allocation5 + $0x90] sm:$0xff]
        %v361 = vld [vmem:[#allocation5 + $0x98] sm:$0xff]
        %v362 = vld [vmem:[#allocation5 + $0xa0] sm:$0xff]
        %v363 = vld [vmem:[#allocation5 + $0xa8] sm:$0xff]
        %v364 = vld [vmem:[#allocation5 + $0xb0] sm:$0xff]
        %v365 = vld [vmem:[#allocation5 + $0xb8] sm:$0xff]
        %v366 = vld [vmem:[#allocation5 + $0xc0] sm:$0xff]
        %v367 = vld [vmem:[#allocation5 + $0xc8] sm:$0xff]
        %v368 = vld [vmem:[#allocation5 + $0xd0] sm:$0xff]
        %v369 = vld [vmem:[#allocation5 + $0xd8] sm:$0xff]
        %v370 = vld [vmem:[#allocation5 + $0xe0] sm:$0xff]
        %v371 = vld [vmem:[#allocation5 + $0xe8] sm:$0xff]
        %v372 = vld [vmem:[#allocation5 + $0xf0] sm:$0xff]
        %v373 = vld [vmem:[#allocation5 + $0xf8] sm:$0xff]
        %v374 = vld [vmem:[#allocation5 + $0x100] sm:$0xff]
        %v375 = vld [vmem:[#allocation5 + $0x108] sm:$0xff]
        %v376 = vld [vmem:[#allocation5 + $0x110] sm:$0xff]
        %v377 = vld [vmem:[#allocation5 + $0x118] sm:$0xff]
        %v378 = vld [vmem:[#allocation5 + $0x120] sm:$0xff]
        %v379 = vld [vmem:[#allocation5 + $0x128] sm:$0xff]
        %v380 = vld [vmem:[#allocation5 + $0x130] sm:$0xff]
        %v381 = vld [vmem:[#allocation5 + $0x138] sm:$0xff]
        %v382 = vld [vmem:[#allocation5 + $0x140] sm:$0xff]
        %v383 = vld [vmem:[#allocation5 + $0x148] sm:$0xff]
        %v384 = vld [vmem:[#allocation5 + $0x150] sm:$0xff]
        %v385 = vld [vmem:[#allocation5 + $0x158] sm:$0xff]
        %v386 = vld [vmem:[#allocation5 + $0x160] sm:$0xff]
        %v387 = vld [vmem:[#allocation5 + $0x168] sm:$0xff]
        %v388 = vld [vmem:[#allocation5 + $0x170] sm:$0xff]
        %v389 = vld [vmem:[#allocation5 + $0x178] sm:$0xff]
        %v390 = vld [vmem:[#allocation5 + $0x180] sm:$0xff]
        %v391 = vld [vmem:[#allocation5 + $0x188] sm:$0xff]
        %v392 = vld [vmem:[#allocation5 + $0x190] sm:$0xff]
        %v393 = vld [vmem:[#allocation5 + $0x198] sm:$0xff]
        %v394 = vld [vmem:[#allocation5 + $0x1a0] sm:$0xff]
        %v395 = vld [vmem:[#allocation5 + $0x1a8] sm:$0xff]
        %v396 = vld [vmem:[#allocation5 + $0x1b0] sm:$0xff]
        %v397 = vld [vmem:[#allocation5 + $0x1b8] sm:$0xff]
        %v398 = vld [vmem:[#allocation5 + $0x1c0] sm:$0xff]
        %v399 = vld [vmem:[#allocation5 + $0x1c8] sm:$0xff]
        %v400 = vld [vmem:[#allocation5 + $0x1d0] sm:$0xff]
        %v401 = vld [vmem:[#allocation5 + $0x1d8] sm:$0xff]
        %v402 = vld [vmem:[#allocation5 + $0x1e0] sm:$0xff]
        %v403 = vld [vmem:[#allocation5 + $0x1e8] sm:$0xff]
        %v404 = vld [vmem:[#allocation5 + $0x1f0] sm:$0xff]
        %v405 = vld [vmem:[#allocation5 + $0x1f8] sm:$0xff]
        %v406 = vld [vmem:[#allocation5 + $0x200] sm:$0xff]
        %v407 = vld [vmem:[#allocation5 + $0x208] sm:$0xff]
        %v408 = vld [vmem:[#allocation5 + $0x210] sm:$0xff]
        %v409 = vld [vmem:[#allocation5 + $0x218] sm:$0xff]
        %v410 = vld [vmem:[#allocation5 + $0x220] sm:$0xff]
        %v411 = vld [vmem:[#allocation5 + $0x228] sm:$0xff]
        %v412 = vld [vmem:[#allocation5 + $0x230] sm:$0xff]
        %v413 = vld [vmem:[#allocation5 + $0x238] sm:$0xff]
        %v414 = vld [vmem:[#allocation5 + $0x240] sm:$0xff]
        %v415 = vld [vmem:[#allocation5 + $0x248] sm:$0xff]
        %v416 = vld [vmem:[#allocation5 + $0x250] sm:$0xff]
        %v417 = vld [vmem:[#allocation5 + $0x258] sm:$0xff]
        %v418 = vld [vmem:[#allocation5 + $0x260] sm:$0xff]
        %v419 = vld [vmem:[#allocation5 + $0x268] sm:$0xff]
        %v420 = vld [vmem:[#allocation5 + $0x270] sm:$0xff]
        %v421 = vld [vmem:[#allocation5 + $0x278] sm:$0xff]
        %v422 = vld [vmem:[#allocation5 + $0x280] sm:$0xff]
        %v423 = vld [vmem:[#allocation5 + $0x288] sm:$0xff]
        %v424 = vld [vmem:[#allocation5 + $0x290] sm:$0xff]
        %v425 = vld [vmem:[#allocation5 + $0x298] sm:$0xff]
        %v426 = vld [vmem:[#allocation5 + $0x2a0] sm:$0xff]
        %v427 = vld [vmem:[#allocation5 + $0x2a8] sm:$0xff]
        %v428 = vld [vmem:[#allocation5 + $0x2b0] sm:$0xff]
        %v429 = vld [vmem:[#allocation5 + $0x2b8] sm:$0xff]
        %v430 = vld [vmem:[#allocation5 + $0x2c0] sm:$0xff]
        %v431 = vld [vmem:[#allocation5 + $0x2c8] sm:$0xff]
        %v432 = vld [vmem:[#allocation5 + $0x2d0] sm:$0xff]
        %v433 = vld [vmem:[#allocation5 + $0x2d8] sm:$0xff]
        %v434 = vld [vmem:[#allocation5 + $0x2e0] sm:$0xff]
        %v435 = vld [vmem:[#allocation5 + $0x2e8] sm:$0xff]
        %v436 = vld [vmem:[#allocation5 + $0x2f0] sm:$0xff]
        %v437 = vld [vmem:[#allocation5 + $0x2f8] sm:$0xff]
        %v438 = vld [vmem:[#allocation5 + $0x300] sm:$0xff]
        %v439 = vld [vmem:[#allocation5 + $0x308] sm:$0xff]
        %v440 = vld [vmem:[#allocation5 + $0x310] sm:$0xff]
        %v441 = vld [vmem:[#allocation5 + $0x318] sm:$0xff]
        %v442 = vld [vmem:[#allocation5 + $0x320] sm:$0xff]
        %v443 = vld [vmem:[#allocation5 + $0x328] sm:$0xff]
        %v444 = vld [vmem:[#allocation5 + $0x330] sm:$0xff]
        %v445 = vld [vmem:[#allocation5 + $0x338] sm:$0xff]
        %v446 = vld [vmem:[#allocation5 + $0x340] sm:$0xff]
        %v447 = vld [vmem:[#allocation5 + $0x348] sm:$0xff]
        %v448 = vld [vmem:[#allocation5 + $0x350] sm:$0xff]
        %v449 = vld [vmem:[#allocation5 + $0x358] sm:$0xff]
        %v450 = vld [vmem:[#allocation5 + $0x360] sm:$0xff]
        %v451 = vld [vmem:[#allocation5 + $0x368] sm:$0xff]
        %v452 = vld [vmem:[#allocation5 + $0x370] sm:$0xff]
        %v453 = vld [vmem:[#allocation5 + $0x378] sm:$0xff]
        %v454 = vld [vmem:[#allocation5 + $0x380] sm:$0xff]
        %v455 = vld [vmem:[#allocation5 + $0x388] sm:$0xff]
        %v456 = vld [vmem:[#allocation5 + $0x390] sm:$0xff]
        %v457 = vld [vmem:[#allocation5 + $0x398] sm:$0xff]
        %v458 = vld [vmem:[#allocation5 + $0x3a0] sm:$0xff]
        %v459 = vld [vmem:[#allocation5 + $0x3a8] sm:$0xff]
        %v460 = vld [vmem:[#allocation5 + $0x3b0] sm:$0xff]
        %v461 = vld [vmem:[#allocation5 + $0x3b8] sm:$0xff]
        %v462 = vld [vmem:[#allocation5 + $0x3c0] sm:$0xff]
        %v463 = vld [vmem:[#allocation5 + $0x3c8] sm:$0xff]
        %v464 = vld [vmem:[#allocation5 + $0x3d0] sm:$0xff]
        %v465 = vld [vmem:[#allocation5 + $0x3d8] sm:$0xff]
        %v466 = vld [vmem:[#allocation5 + $0x3e0] sm:$0xff]
        %v467 = vld [vmem:[#allocation5 + $0x3e8] sm:$0xff]
        %v468 = vld [vmem:[#allocation5 + $0x3f0] sm:$0xff]
        %v469 = vld [vmem:[#allocation5 + $0x3f8] sm:$0xff]
        %v470 = vld [vmem:[#allocation5 + $0x400] sm:$0xff]
        %v471 = vld [vmem:[#allocation5 + $0x408] sm:$0xff]
        %v472 = vld [vmem:[#allocation5 + $0x410] sm:$0xff]
        %v473 = vld [vmem:[#allocation5 + $0x418] sm:$0xff]
        %v474 = vld [vmem:[#allocation5 + $0x420] sm:$0xff]
        %v475 = vld [vmem:[#allocation5 + $0x428] sm:$0xff]
        %v476 = vld [vmem:[#allocation5 + $0x430] sm:$0xff]
        %v477 = vld [vmem:[#allocation5 + $0x438] sm:$0xff]
        %v478 = vld [vmem:[#allocation5 + $0x440] sm:$0xff]
        %v479 = vld [vmem:[#allocation5 + $0x448] sm:$0xff]
        %v480 = vld [vmem:[#allocation5 + $0x450] sm:$0xff]
        %v481 = vld [vmem:[#allocation5 + $0x458] sm:$0xff]
        %v482 = vld [vmem:[#allocation5 + $0x460] sm:$0xff]
        %v483 = vld [vmem:[#allocation5 + $0x468] sm:$0xff]
        %v484 = vld [vmem:[#allocation5 + $0x470] sm:$0xff]
        %v485 = vld [vmem:[#allocation5 + $0x478] sm:$0xff]
        %v486 = vld [vmem:[#allocation5 + $0x480] sm:$0xff]
        %v487 = vld [vmem:[#allocation5 + $0x488] sm:$0xff]
        %v488 = vld [vmem:[#allocation5 + $0x490] sm:$0xff]
        %v489 = vld [vmem:[#allocation5 + $0x498] sm:$0xff]
        %v490 = vld [vmem:[#allocation5 + $0x4a0] sm:$0xff]
        %v491 = vld [vmem:[#allocation5 + $0x4a8] sm:$0xff]
        %v492 = vld [vmem:[#allocation5 + $0x4b0] sm:$0xff]
        %v493 = vld [vmem:[#allocation5 + $0x4b8] sm:$0xff]
        %v494 = vld [vmem:[#allocation5 + $0x4c0] sm:$0xff]
        %v495 = vld [vmem:[#allocation5 + $0x4c8] sm:$0xff]
        %v496 = vld [vmem:[#allocation5 + $0x4d0] sm:$0xff]
        %v497 = vld [vmem:[#allocation5 + $0x4d8] sm:$0xff]
        %v498 = vld [vmem:[#allocation5 + $0x4e0] sm:$0xff]
        %v499 = vld [vmem:[#allocation5 + $0x4e8] sm:$0xff]
        %v500 = vld [vmem:[#allocation5 + $0x4f0] sm:$0xff]
        %v501 = vld [vmem:[#allocation5 + $0x4f8] sm:$0xff]
        %v662 = vunpack.c.l.b16 %v342
        %v663 = vunpack.c.h.b16 %v342
        %v664 = vunpack.c.l.b16 %v343
        %v665 = vunpack.c.h.b16 %v343
        %v666 = vunpack.c.l.b16 %v344
        %v667 = vunpack.c.h.b16 %v344
        %v668 = vunpack.c.l.b16 %v345
        %v669 = vunpack.c.h.b16 %v345
        %v670 = vunpack.c.l.b16 %v346
        %v671 = vunpack.c.h.b16 %v346
        %v672 = vunpack.c.l.b16 %v347
        %v673 = vunpack.c.h.b16 %v347
        %v674 = vunpack.c.l.b16 %v348
        %v675 = vunpack.c.h.b16 %v348
        %v676 = vunpack.c.l.b16 %v349
        %v677 = vunpack.c.h.b16 %v349
        %v678 = vunpack.c.l.b16 %v350
        %v679 = vunpack.c.h.b16 %v350
        %v680 = vunpack.c.l.b16 %v351
        %v681 = vunpack.c.h.b16 %v351
        %v682 = vunpack.c.l.b16 %v352
        %v683 = vunpack.c.h.b16 %v352
        %v684 = vunpack.c.l.b16 %v353
        %v685 = vunpack.c.h.b16 %v353
        %v686 = vunpack.c.l.b16 %v354
        %v687 = vunpack.c.h.b16 %v354
        %v688 = vunpack.c.l.b16 %v355
        %v689 = vunpack.c.h.b16 %v355
        %v690 = vunpack.c.l.b16 %v356
        %v691 = vunpack.c.h.b16 %v356
        %v692 = vunpack.c.l.b16 %v357
        %v693 = vunpack.c.h.b16 %v357
        %v694 = vunpack.c.l.b16 %v358
        %v695 = vunpack.c.h.b16 %v358
        %v696 = vunpack.c.l.b16 %v359
        %v697 = vunpack.c.h.b16 %v359
        %v698 = vunpack.c.l.b16 %v360
        %v699 = vunpack.c.h.b16 %v360
        %v700 = vunpack.c.l.b16 %v361
        %v701 = vunpack.c.h.b16 %v361
        %v702 = vunpack.c.l.b16 %v362
        %v703 = vunpack.c.h.b16 %v362
        %v704 = vunpack.c.l.b16 %v363
        %v705 = vunpack.c.h.b16 %v363
        %v706 = vunpack.c.l.b16 %v364
        %v707 = vunpack.c.h.b16 %v364
        %v708 = vunpack.c.l.b16 %v365
        %v709 = vunpack.c.h.b16 %v365
        %v710 = vunpack.c.l.b16 %v366
        %v711 = vunpack.c.h.b16 %v366
        %v712 = vunpack.c.l.b16 %v367
        %v713 = vunpack.c.h.b16 %v367
        %v714 = vunpack.c.l.b16 %v368
        %v715 = vunpack.c.h.b16 %v368
        %v716 = vunpack.c.l.b16 %v369
        %v717 = vunpack.c.h.b16 %v369
        %v718 = vunpack.c.l.b16 %v370
        %v719 = vunpack.c.h.b16 %v370
        %v720 = vunpack.c.l.b16 %v371
        %v721 = vunpack.c.h.b16 %v371
        %v722 = vunpack.c.l.b16 %v372
        %v723 = vunpack.c.h.b16 %v372
        %v724 = vunpack.c.l.b16 %v373
        %v725 = vunpack.c.h.b16 %v373
        %v726 = vunpack.c.l.b16 %v374
        %v727 = vunpack.c.h.b16 %v374
        %v728 = vunpack.c.l.b16 %v375
        %v729 = vunpack.c.h.b16 %v375
        %v730 = vunpack.c.l.b16 %v376
        %v731 = vunpack.c.h.b16 %v376
        %v732 = vunpack.c.l.b16 %v377
        %v733 = vunpack.c.h.b16 %v377
        %v734 = vunpack.c.l.b16 %v378
        %v735 = vunpack.c.h.b16 %v378
        %v736 = vunpack.c.l.b16 %v379
        %v737 = vunpack.c.h.b16 %v379
        %v738 = vunpack.c.l.b16 %v380
        %v739 = vunpack.c.h.b16 %v380
        %v740 = vunpack.c.l.b16 %v381
        %v741 = vunpack.c.h.b16 %v381
        %v742 = vunpack.c.l.b16 %v382
        %v743 = vunpack.c.h.b16 %v382
        %v744 = vunpack.c.l.b16 %v383
        %v745 = vunpack.c.h.b16 %v383
        %v746 = vunpack.c.l.b16 %v384
        %v747 = vunpack.c.h.b16 %v384
        %v748 = vunpack.c.l.b16 %v385
        %v749 = vunpack.c.h.b16 %v385
        %v750 = vunpack.c.l.b16 %v386
        %v751 = vunpack.c.h.b16 %v386
        %v752 = vunpack.c.l.b16 %v387
        %v753 = vunpack.c.h.b16 %v387
        %v754 = vunpack.c.l.b16 %v388
        %v755 = vunpack.c.h.b16 %v388
        %v756 = vunpack.c.l.b16 %v389
        %v757 = vunpack.c.h.b16 %v389
        %v758 = vunpack.c.l.b16 %v390
        %v759 = vunpack.c.h.b16 %v390
        %v760 = vunpack.c.l.b16 %v391
        %v761 = vunpack.c.h.b16 %v391
        %v762 = vunpack.c.l.b16 %v392
        %v763 = vunpack.c.h.b16 %v392
        %v764 = vunpack.c.l.b16 %v393
        %v765 = vunpack.c.h.b16 %v393
        %v766 = vunpack.c.l.b16 %v394
        %v767 = vunpack.c.h.b16 %v394
        %v768 = vunpack.c.l.b16 %v395
        %v769 = vunpack.c.h.b16 %v395
        %v770 = vunpack.c.l.b16 %v396
        %v771 = vunpack.c.h.b16 %v396
        %v772 = vunpack.c.l.b16 %v397
        %v773 = vunpack.c.h.b16 %v397
        %v774 = vunpack.c.l.b16 %v398
        %v775 = vunpack.c.h.b16 %v398
        %v776 = vunpack.c.l.b16 %v399
        %v777 = vunpack.c.h.b16 %v399
        %v778 = vunpack.c.l.b16 %v400
        %v779 = vunpack.c.h.b16 %v400
        %v780 = vunpack.c.l.b16 %v401
        %v781 = vunpack.c.h.b16 %v401
        %v782 = vunpack.c.l.b16 %v402
        %v783 = vunpack.c.h.b16 %v402
        %v784 = vunpack.c.l.b16 %v403
        %v785 = vunpack.c.h.b16 %v403
        %v786 = vunpack.c.l.b16 %v404
        %v787 = vunpack.c.h.b16 %v404
        %v788 = vunpack.c.l.b16 %v405
        %v789 = vunpack.c.h.b16 %v405
        %v790 = vunpack.c.l.b16 %v406
        %v791 = vunpack.c.h.b16 %v406
        %v792 = vunpack.c.l.b16 %v407
        %v793 = vunpack.c.h.b16 %v407
        %v794 = vunpack.c.l.b16 %v408
        %v795 = vunpack.c.h.b16 %v408
        %v796 = vunpack.c.l.b16 %v409
        %v797 = vunpack.c.h.b16 %v409
        %v798 = vunpack.c.l.b16 %v410
        %v799 = vunpack.c.h.b16 %v410
        %v800 = vunpack.c.l.b16 %v411
        %v801 = vunpack.c.h.b16 %v411
        %v802 = vunpack.c.l.b16 %v412
        %v803 = vunpack.c.h.b16 %v412
        %v804 = vunpack.c.l.b16 %v413
        %v805 = vunpack.c.h.b16 %v413
        %v806 = vunpack.c.l.b16 %v414
        %v807 = vunpack.c.h.b16 %v414
        %v808 = vunpack.c.l.b16 %v415
        %v809 = vunpack.c.h.b16 %v415
        %v810 = vunpack.c.l.b16 %v416
        %v811 = vunpack.c.h.b16 %v416
        %v812 = vunpack.c.l.b16 %v417
        %v813 = vunpack.c.h.b16 %v417
        %v814 = vunpack.c.l.b16 %v418
        %v815 = vunpack.c.h.b16 %v418
        %v816 = vunpack.c.l.b16 %v419
        %v817 = vunpack.c.h.b16 %v419
        %v818 = vunpack.c.l.b16 %v420
        %v819 = vunpack.c.h.b16 %v420
        %v820 = vunpack.c.l.b16 %v421
        %v821 = vunpack.c.h.b16 %v421
        %v822 = vunpack.c.l.b16 %v422
        %v823 = vunpack.c.h.b16 %v422
        %v824 = vunpack.c.l.b16 %v423
        %v825 = vunpack.c.h.b16 %v423
        %v826 = vunpack.c.l.b16 %v424
        %v827 = vunpack.c.h.b16 %v424
        %v828 = vunpack.c.l.b16 %v425
        %v829 = vunpack.c.h.b16 %v425
        %v830 = vunpack.c.l.b16 %v426
        %v831 = vunpack.c.h.b16 %v426
        %v832 = vunpack.c.l.b16 %v427
        %v833 = vunpack.c.h.b16 %v427
        %v834 = vunpack.c.l.b16 %v428
        %v835 = vunpack.c.h.b16 %v428
        %v836 = vunpack.c.l.b16 %v429
        %v837 = vunpack.c.h.b16 %v429
        %v838 = vunpack.c.l.b16 %v430
        %v839 = vunpack.c.h.b16 %v430
        %v840 = vunpack.c.l.b16 %v431
        %v841 = vunpack.c.h.b16 %v431
        %v842 = vunpack.c.l.b16 %v432
        %v843 = vunpack.c.h.b16 %v432
        %v844 = vunpack.c.l.b16 %v433
        %v845 = vunpack.c.h.b16 %v433
        %v846 = vunpack.c.l.b16 %v434
        %v847 = vunpack.c.h.b16 %v434
        %v848 = vunpack.c.l.b16 %v435
        %v849 = vunpack.c.h.b16 %v435
        %v850 = vunpack.c.l.b16 %v436
        %v851 = vunpack.c.h.b16 %v436
        %v852 = vunpack.c.l.b16 %v437
        %v853 = vunpack.c.h.b16 %v437
        %v854 = vunpack.c.l.b16 %v438
        %v855 = vunpack.c.h.b16 %v438
        %v856 = vunpack.c.l.b16 %v439
        %v857 = vunpack.c.h.b16 %v439
        %v858 = vunpack.c.l.b16 %v440
        %v859 = vunpack.c.h.b16 %v440
        %v860 = vunpack.c.l.b16 %v441
        %v861 = vunpack.c.h.b16 %v441
        %v862 = vunpack.c.l.b16 %v442
        %v863 = vunpack.c.h.b16 %v442
        %v864 = vunpack.c.l.b16 %v443
        %v865 = vunpack.c.h.b16 %v443
        %v866 = vunpack.c.l.b16 %v444
        %v867 = vunpack.c.h.b16 %v444
        %v868 = vunpack.c.l.b16 %v445
        %v869 = vunpack.c.h.b16 %v445
        %v870 = vunpack.c.l.b16 %v446
        %v871 = vunpack.c.h.b16 %v446
        %v872 = vunpack.c.l.b16 %v447
        %v873 = vunpack.c.h.b16 %v447
        %v874 = vunpack.c.l.b16 %v448
        %v875 = vunpack.c.h.b16 %v448
        %v876 = vunpack.c.l.b16 %v449
        %v877 = vunpack.c.h.b16 %v449
        %v878 = vunpack.c.l.b16 %v450
        %v879 = vunpack.c.h.b16 %v450
        %v880 = vunpack.c.l.b16 %v451
        %v881 = vunpack.c.h.b16 %v451
        %v882 = vunpack.c.l.b16 %v452
        %v883 = vunpack.c.h.b16 %v452
        %v884 = vunpack.c.l.b16 %v453
        %v885 = vunpack.c.h.b16 %v453
        %v886 = vunpack.c.l.b16 %v454
        %v887 = vunpack.c.h.b16 %v454
        %v888 = vunpack.c.l.b16 %v455
        %v889 = vunpack.c.h.b16 %v455
        %v890 = vunpack.c.l.b16 %v456
        %v891 = vunpack.c.h.b16 %v456
        %v892 = vunpack.c.l.b16 %v457
        %v893 = vunpack.c.h.b16 %v457
        %v894 = vunpack.c.l.b16 %v458
        %v895 = vunpack.c.h.b16 %v458
        %v896 = vunpack.c.l.b16 %v459
        %v897 = vunpack.c.h.b16 %v459
        %v898 = vunpack.c.l.b16 %v460
        %v899 = vunpack.c.h.b16 %v460
        %v900 = vunpack.c.l.b16 %v461
        %v901 = vunpack.c.h.b16 %v461
        %v902 = vunpack.c.l.b16 %v462
        %v903 = vunpack.c.h.b16 %v462
        %v904 = vunpack.c.l.b16 %v463
        %v905 = vunpack.c.h.b16 %v463
        %v906 = vunpack.c.l.b16 %v464
        %v907 = vunpack.c.h.b16 %v464
        %v908 = vunpack.c.l.b16 %v465
        %v909 = vunpack.c.h.b16 %v465
        %v910 = vunpack.c.l.b16 %v466
        %v911 = vunpack.c.h.b16 %v466
        %v912 = vunpack.c.l.b16 %v467
        %v913 = vunpack.c.h.b16 %v467
        %v914 = vunpack.c.l.b16 %v468
        %v915 = vunpack.c.h.b16 %v468
        %v916 = vunpack.c.l.b16 %v469
        %v917 = vunpack.c.h.b16 %v469
        %v918 = vunpack.c.l.b16 %v470
        %v919 = vunpack.c.h.b16 %v470
        %v920 = vunpack.c.l.b16 %v471
        %v921 = vunpack.c.h.b16 %v471
        %v922 = vunpack.c.l.b16 %v472
        %v923 = vunpack.c.h.b16 %v472
        %v924 = vunpack.c.l.b16 %v473
        %v925 = vunpack.c.h.b16 %v473
        %v926 = vunpack.c.l.b16 %v474
        %v927 = vunpack.c.h.b16 %v474
        %v928 = vunpack.c.l.b16 %v475
        %v929 = vunpack.c.h.b16 %v475
        %v930 = vunpack.c.l.b16 %v476
        %v931 = vunpack.c.h.b16 %v476
        %v932 = vunpack.c.l.b16 %v477
        %v933 = vunpack.c.h.b16 %v477
        %v934 = vunpack.c.l.b16 %v478
        %v935 = vunpack.c.h.b16 %v478
        %v936 = vunpack.c.l.b16 %v479
        %v937 = vunpack.c.h.b16 %v479
        %v938 = vunpack.c.l.b16 %v480
        %v939 = vunpack.c.h.b16 %v480
        %v940 = vunpack.c.l.b16 %v481
        %v941 = vunpack.c.h.b16 %v481
        %v942 = vunpack.c.l.b16 %v482
        %v943 = vunpack.c.h.b16 %v482
        %v944 = vunpack.c.l.b16 %v483
        %v945 = vunpack.c.h.b16 %v483
        %v946 = vunpack.c.l.b16 %v484
        %v947 = vunpack.c.h.b16 %v484
        %v948 = vunpack.c.l.b16 %v485
        %v949 = vunpack.c.h.b16 %v485
        %v950 = vunpack.c.l.b16 %v486
        %v951 = vunpack.c.h.b16 %v486
        %v952 = vunpack.c.l.b16 %v487
        %v953 = vunpack.c.h.b16 %v487
        %v954 = vunpack.c.l.b16 %v488
        %v955 = vunpack.c.h.b16 %v488
        %v956 = vunpack.c.l.b16 %v489
        %v957 = vunpack.c.h.b16 %v489
        %v958 = vunpack.c.l.b16 %v490
        %v959 = vunpack.c.h.b16 %v490
        %v960 = vunpack.c.l.b16 %v491
        %v961 = vunpack.c.h.b16 %v491
        %v962 = vunpack.c.l.b16 %v492
        %v963 = vunpack.c.h.b16 %v492
        %v964 = vunpack.c.l.b16 %v493
        %v965 = vunpack.c.h.b16 %v493
        %v966 = vunpack.c.l.b16 %v494
        %v967 = vunpack.c.h.b16 %v494
        %v968 = vunpack.c.l.b16 %v495
        %v969 = vunpack.c.h.b16 %v495
        %v970 = vunpack.c.l.b16 %v496
        %v971 = vunpack.c.h.b16 %v496
        %v972 = vunpack.c.l.b16 %v497
        %v973 = vunpack.c.h.b16 %v497
        %v974 = vunpack.c.l.b16 %v498
        %v975 = vunpack.c.h.b16 %v498
        %v976 = vunpack.c.l.b16 %v499
        %v977 = vunpack.c.h.b16 %v499
        %v978 = vunpack.c.l.b16 %v500
        %v979 = vunpack.c.h.b16 %v500
        %v980 = vunpack.c.l.b16 %v501
        %v981 = vunpack.c.h.b16 %v501
        %v982 = vpack.c.b16 %v682, %v662
        %v983 = vpack.c.b16 %v683, %v663
        %v984 = vpack.c.b16 %v684, %v664
        %v985 = vpack.c.b16 %v685, %v665
        %v986 = vpack.c.b16 %v686, %v666
        %v987 = vpack.c.b16 %v687, %v667
        %v988 = vpack.c.b16 %v688, %v668
        %v989 = vpack.c.b16 %v689, %v669
        %v990 = vpack.c.b16 %v690, %v670
        %v991 = vpack.c.b16 %v691, %v671
        %v992 = vpack.c.b16 %v692, %v672
        %v993 = vpack.c.b16 %v693, %v673
        %v994 = vpack.c.b16 %v694, %v674
        %v995 = vpack.c.b16 %v695, %v675
        %v996 = vpack.c.b16 %v696, %v676
        %v997 = vpack.c.b16 %v697, %v677
        %v998 = vpack.c.b16 %v698, %v678
        %v999 = vpack.c.b16 %v699, %v679
        %v1000 = vpack.c.b16 %v700, %v680
        %v1001 = vpack.c.b16 %v701, %v681
        %v1002 = vpack.c.b16 %v722, %v702
        %v1003 = vpack.c.b16 %v723, %v703
        %v1004 = vpack.c.b16 %v724, %v704
        %v1005 = vpack.c.b16 %v725, %v705
        %v1006 = vpack.c.b16 %v726, %v706
        %v1007 = vpack.c.b16 %v727, %v707
        %v1008 = vpack.c.b16 %v728, %v708
        %v1009 = vpack.c.b16 %v729, %v709
        %v1010 = vpack.c.b16 %v730, %v710
        %v1011 = vpack.c.b16 %v731, %v711
        %v1012 = vpack.c.b16 %v732, %v712
        %v1013 = vpack.c.b16 %v733, %v713
        %v1014 = vpack.c.b16 %v734, %v714
        %v1015 = vpack.c.b16 %v735, %v715
        %v1016 = vpack.c.b16 %v736, %v716
        %v1017 = vpack.c.b16 %v737, %v717
        %v1018 = vpack.c.b16 %v738, %v718
        %v1019 = vpack.c.b16 %v739, %v719
        %v1020 = vpack.c.b16 %v740, %v720
        %v1021 = vpack.c.b16 %v741, %v721
        %v1022 = vpack.c.b16 %v762, %v742
        %v1023 = vpack.c.b16 %v763, %v743
        %v1024 = vpack.c.b16 %v764, %v744
        %v1025 = vpack.c.b16 %v765, %v745
        %v1026 = vpack.c.b16 %v766, %v746
        %v1027 = vpack.c.b16 %v767, %v747
        %v1028 = vpack.c.b16 %v768, %v748
        %v1029 = vpack.c.b16 %v769, %v749
        %v1030 = vpack.c.b16 %v770, %v750
        %v1031 = vpack.c.b16 %v771, %v751
        %v1032 = vpack.c.b16 %v772, %v752
        %v1033 = vpack.c.b16 %v773, %v753
        %v1034 = vpack.c.b16 %v774, %v754
        %v1035 = vpack.c.b16 %v775, %v755
        %v1036 = vpack.c.b16 %v776, %v756
        %v1037 = vpack.c.b16 %v777, %v757
        %v1038 = vpack.c.b16 %v778, %v758
        %v1039 = vpack.c.b16 %v779, %v759
        %v1040 = vpack.c.b16 %v780, %v760
        %v1041 = vpack.c.b16 %v781, %v761
        %v1042 = vpack.c.b16 %v802, %v782
        %v1043 = vpack.c.b16 %v803, %v783
        %v1044 = vpack.c.b16 %v804, %v784
        %v1045 = vpack.c.b16 %v805, %v785
        %v1046 = vpack.c.b16 %v806, %v786
        %v1047 = vpack.c.b16 %v807, %v787
        %v1048 = vpack.c.b16 %v808, %v788
        %v1049 = vpack.c.b16 %v809, %v789
        %v1050 = vpack.c.b16 %v810, %v790
        %v1051 = vpack.c.b16 %v811, %v791
        %v1052 = vpack.c.b16 %v812, %v792
        %v1053 = vpack.c.b16 %v813, %v793
        %v1054 = vpack.c.b16 %v814, %v794
        %v1055 = vpack.c.b16 %v815, %v795
        %v1056 = vpack.c.b16 %v816, %v796
        %v1057 = vpack.c.b16 %v817, %v797
        %v1058 = vpack.c.b16 %v818, %v798
        %v1059 = vpack.c.b16 %v819, %v799
        %v1060 = vpack.c.b16 %v820, %v800
        %v1061 = vpack.c.b16 %v821, %v801
        %v1062 = vpack.c.b16 %v842, %v822
        %v1063 = vpack.c.b16 %v843, %v823
        %v1064 = vpack.c.b16 %v844, %v824
        %v1065 = vpack.c.b16 %v845, %v825
        %v1066 = vpack.c.b16 %v846, %v826
        %v1067 = vpack.c.b16 %v847, %v827
        %v1068 = vpack.c.b16 %v848, %v828
        %v1069 = vpack.c.b16 %v849, %v829
        %v1070 = vpack.c.b16 %v850, %v830
        %v1071 = vpack.c.b16 %v851, %v831
        %v1072 = vpack.c.b16 %v852, %v832
        %v1073 = vpack.c.b16 %v853, %v833
        %v1074 = vpack.c.b16 %v854, %v834
        %v1075 = vpack.c.b16 %v855, %v835
        %v1076 = vpack.c.b16 %v856, %v836
        %v1077 = vpack.c.b16 %v857, %v837
        %v1078 = vpack.c.b16 %v858, %v838
        %v1079 = vpack.c.b16 %v859, %v839
        %v1080 = vpack.c.b16 %v860, %v840
        %v1081 = vpack.c.b16 %v861, %v841
        %v1082 = vpack.c.b16 %v882, %v862
        %v1083 = vpack.c.b16 %v883, %v863
        %v1084 = vpack.c.b16 %v884, %v864
        %v1085 = vpack.c.b16 %v885, %v865
        %v1086 = vpack.c.b16 %v886, %v866
        %v1087 = vpack.c.b16 %v887, %v867
        %v1088 = vpack.c.b16 %v888, %v868
        %v1089 = vpack.c.b16 %v889, %v869
        %v1090 = vpack.c.b16 %v890, %v870
        %v1091 = vpack.c.b16 %v891, %v871
        %v1092 = vpack.c.b16 %v892, %v872
        %v1093 = vpack.c.b16 %v893, %v873
        %v1094 = vpack.c.b16 %v894, %v874
        %v1095 = vpack.c.b16 %v895, %v875
        %v1096 = vpack.c.b16 %v896, %v876
        %v1097 = vpack.c.b16 %v897, %v877
        %v1098 = vpack.c.b16 %v898, %v878
        %v1099 = vpack.c.b16 %v899, %v879
        %v1100 = vpack.c.b16 %v900, %v880
        %v1101 = vpack.c.b16 %v901, %v881
        %v1102 = vpack.c.b16 %v922, %v902
        %v1103 = vpack.c.b16 %v923, %v903
        %v1104 = vpack.c.b16 %v924, %v904
        %v1105 = vpack.c.b16 %v925, %v905
        %v1106 = vpack.c.b16 %v926, %v906
        %v1107 = vpack.c.b16 %v927, %v907
        %v1108 = vpack.c.b16 %v928, %v908
        %v1109 = vpack.c.b16 %v929, %v909
        %v1110 = vpack.c.b16 %v930, %v910
        %v1111 = vpack.c.b16 %v931, %v911
        %v1112 = vpack.c.b16 %v932, %v912
        %v1113 = vpack.c.b16 %v933, %v913
        %v1114 = vpack.c.b16 %v934, %v914
        %v1115 = vpack.c.b16 %v935, %v915
        %v1116 = vpack.c.b16 %v936, %v916
        %v1117 = vpack.c.b16 %v937, %v917
        %v1118 = vpack.c.b16 %v938, %v918
        %v1119 = vpack.c.b16 %v939, %v919
        %v1120 = vpack.c.b16 %v940, %v920
        %v1121 = vpack.c.b16 %v941, %v921
        %v1122 = vpack.c.b16 %v962, %v942
        %v1123 = vpack.c.b16 %v963, %v943
        %v1124 = vpack.c.b16 %v964, %v944
        %v1125 = vpack.c.b16 %v965, %v945
        %v1126 = vpack.c.b16 %v966, %v946
        %v1127 = vpack.c.b16 %v967, %v947
        %v1128 = vpack.c.b16 %v968, %v948
        %v1129 = vpack.c.b16 %v969, %v949
        %v1130 = vpack.c.b16 %v970, %v950
        %v1131 = vpack.c.b16 %v971, %v951
        %v1132 = vpack.c.b16 %v972, %v952
        %v1133 = vpack.c.b16 %v973, %v953
        %v1134 = vpack.c.b16 %v974, %v954
        %v1135 = vpack.c.b16 %v975, %v955
        %v1136 = vpack.c.b16 %v976, %v956
        %v1137 = vpack.c.b16 %v977, %v957
        %v1138 = vpack.c.b16 %v978, %v958
        %v1139 = vpack.c.b16 %v979, %v959
        %v1140 = vpack.c.b16 %v980, %v960
        %v1141 = vpack.c.b16 %v981, %v961
        %1302 = vmatpush.bf16.msra.mxu0 %v1122
        %1303 = vmatpush.bf16.msra.mxu0 %v1102
        %1304 = vmatpush.bf16.msra.mxu0 %v1082
        %1305 = vmatpush.bf16.msra.mxu0 %v1062
        %1306 = vmatpush.bf16.msra.mxu0 %v1042
        %1307 = vmatpush.bf16.msra.mxu0 %v1022
        %1308 = vmatpush.bf16.msra.mxu0 %v1002
        %1309 = vmatpush.bf16.msra.mxu0 %v982
        %1310 = vmatmul.bf16.gmra.mxu0 %v341
        %v1311 = vpop.f32.mrf.mxu0
        %v1312 = vadd.f32 0.0, %v1311
        %v1313 = vpop.f32.mrf.mxu0
        %v1314 = vadd.f32 0.0, %v1313
        %1315 = vdwg.mxu0
        %1316 = vmatpush.bf16.msra.mxu0 %v1123
        %1317 = vmatpush.bf16.msra.mxu0 %v1103
        %1318 = vmatpush.bf16.msra.mxu0 %v1083
        %1319 = vmatpush.bf16.msra.mxu0 %v1063
        %1320 = vmatpush.bf16.msra.mxu0 %v1043
        %1321 = vmatpush.bf16.msra.mxu0 %v1023
        %1322 = vmatpush.bf16.msra.mxu0 %v1003
        %1323 = vmatpush.bf16.msra.mxu0 %v983
        %1324 = vmatmul.bf16.gmra.mxu0 %v341
        %v1325 = vpop.f32.mrf.mxu0
        %v1326 = vadd.f32 0.0, %v1325
        %v1327 = vpop.f32.mrf.mxu0
        %v1328 = vadd.f32 0.0, %v1327
        %1329 = vdwg.mxu0
        %1330 = vmatpush.bf16.msra.mxu0 %v1124
        %1331 = vmatpush.bf16.msra.mxu0 %v1104
        %1332 = vmatpush.bf16.msra.mxu0 %v1084
        %1333 = vmatpush.bf16.msra.mxu0 %v1064
        %1334 = vmatpush.bf16.msra.mxu0 %v1044
        %1335 = vmatpush.bf16.msra.mxu0 %v1024
        %1336 = vmatpush.bf16.msra.mxu0 %v1004
        %1337 = vmatpush.bf16.msra.mxu0 %v984
        %1338 = vmatmul.bf16.gmra.mxu0 %v341
        %v1339 = vpop.f32.mrf.mxu0
        %v1340 = vadd.f32 0.0, %v1339
        %v1341 = vpop.f32.mrf.mxu0
        %v1342 = vadd.f32 0.0, %v1341
        %1343 = vdwg.mxu0
        %1344 = vmatpush.bf16.msra.mxu0 %v1125
        %1345 = vmatpush.bf16.msra.mxu0 %v1105
        %1346 = vmatpush.bf16.msra.mxu0 %v1085
        %1347 = vmatpush.bf16.msra.mxu0 %v1065
        %1348 = vmatpush.bf16.msra.mxu0 %v1045
        %1349 = vmatpush.bf16.msra.mxu0 %v1025
        %1350 = vmatpush.bf16.msra.mxu0 %v1005
        %1351 = vmatpush.bf16.msra.mxu0 %v985
        %1352 = vmatmul.bf16.gmra.mxu0 %v341
        %v1353 = vpop.f32.mrf.mxu0
        %v1354 = vadd.f32 0.0, %v1353
        %v1355 = vpop.f32.mrf.mxu0
        %v1356 = vadd.f32 0.0, %v1355
        %1357 = vdwg.mxu0
        %1358 = vmatpush.bf16.msra.mxu0 %v1126
        %1359 = vmatpush.bf16.msra.mxu0 %v1106
        %1360 = vmatpush.bf16.msra.mxu0 %v1086
        %1361 = vmatpush.bf16.msra.mxu0 %v1066
        %1362 = vmatpush.bf16.msra.mxu0 %v1046
        %1363 = vmatpush.bf16.msra.mxu0 %v1026
        %1364 = vmatpush.bf16.msra.mxu0 %v1006
        %1365 = vmatpush.bf16.msra.mxu0 %v986
        %1366 = vmatmul.bf16.gmra.mxu0 %v341
        %v1367 = vpop.f32.mrf.mxu0
        %v1368 = vadd.f32 0.0, %v1367
        %v1369 = vpop.f32.mrf.mxu0
        %v1370 = vadd.f32 0.0, %v1369
        %1371 = vdwg.mxu0
        %1372 = vmatpush.bf16.msra.mxu0 %v1127
        %1373 = vmatpush.bf16.msra.mxu0 %v1107
        %1374 = vmatpush.bf16.msra.mxu0 %v1087
        %1375 = vmatpush.bf16.msra.mxu0 %v1067
        %1376 = vmatpush.bf16.msra.mxu0 %v1047
        %1377 = vmatpush.bf16.msra.mxu0 %v1027
        %1378 = vmatpush.bf16.msra.mxu0 %v1007
        %1379 = vmatpush.bf16.msra.mxu0 %v987
        %1380 = vmatmul.bf16.gmra.mxu0 %v341
        %v1381 = vpop.f32.mrf.mxu0
        %v1382 = vadd.f32 0.0, %v1381
        %v1383 = vpop.f32.mrf.mxu0
        %v1384 = vadd.f32 0.0, %v1383
        %1385 = vdwg.mxu0
        %1386 = vmatpush.bf16.msra.mxu0 %v1128
        %1387 = vmatpush.bf16.msra.mxu0 %v1108
        %1388 = vmatpush.bf16.msra.mxu0 %v1088
        %1389 = vmatpush.bf16.msra.mxu0 %v1068
        %1390 = vmatpush.bf16.msra.mxu0 %v1048
        %1391 = vmatpush.bf16.msra.mxu0 %v1028
        %1392 = vmatpush.bf16.msra.mxu0 %v1008
        %1393 = vmatpush.bf16.msra.mxu0 %v988
        %1394 = vmatmul.bf16.gmra.mxu0 %v341
        %v1395 = vpop.f32.mrf.mxu0
        %v1396 = vadd.f32 0.0, %v1395
        %v1397 = vpop.f32.mrf.mxu0
        %v1398 = vadd.f32 0.0, %v1397
        %1399 = vdwg.mxu0
        %1400 = vmatpush.bf16.msra.mxu0 %v1129
        %1401 = vmatpush.bf16.msra.mxu0 %v1109
        %1402 = vmatpush.bf16.msra.mxu0 %v1089
        %1403 = vmatpush.bf16.msra.mxu0 %v1069
        %1404 = vmatpush.bf16.msra.mxu0 %v1049
        %1405 = vmatpush.bf16.msra.mxu0 %v1029
        %1406 = vmatpush.bf16.msra.mxu0 %v1009
        %1407 = vmatpush.bf16.msra.mxu0 %v989
        %1408 = vmatmul.bf16.gmra.mxu0 %v341
        %v1409 = vpop.f32.mrf.mxu0
        %v1410 = vadd.f32 0.0, %v1409
        %v1411 = vpop.f32.mrf.mxu0
        %v1412 = vadd.f32 0.0, %v1411
        %1413 = vdwg.mxu0
        %1414 = vmatpush.bf16.msra.mxu0 %v1130
        %1415 = vmatpush.bf16.msra.mxu0 %v1110
        %1416 = vmatpush.bf16.msra.mxu0 %v1090
        %1417 = vmatpush.bf16.msra.mxu0 %v1070
        %1418 = vmatpush.bf16.msra.mxu0 %v1050
        %1419 = vmatpush.bf16.msra.mxu0 %v1030
        %1420 = vmatpush.bf16.msra.mxu0 %v1010
        %1421 = vmatpush.bf16.msra.mxu0 %v990
        %1422 = vmatmul.bf16.gmra.mxu0 %v341
        %v1423 = vpop.f32.mrf.mxu0
        %v1424 = vadd.f32 0.0, %v1423
        %v1425 = vpop.f32.mrf.mxu0
        %v1426 = vadd.f32 0.0, %v1425
        %1427 = vdwg.mxu0
        %1428 = vmatpush.bf16.msra.mxu0 %v1131
        %1429 = vmatpush.bf16.msra.mxu0 %v1111
        %1430 = vmatpush.bf16.msra.mxu0 %v1091
        %1431 = vmatpush.bf16.msra.mxu0 %v1071
        %1432 = vmatpush.bf16.msra.mxu0 %v1051
        %1433 = vmatpush.bf16.msra.mxu0 %v1031
        %1434 = vmatpush.bf16.msra.mxu0 %v1011
        %1435 = vmatpush.bf16.msra.mxu0 %v991
        %1436 = vmatmul.bf16.gmra.mxu0 %v341
        %v1437 = vpop.f32.mrf.mxu0
        %v1438 = vadd.f32 0.0, %v1437
        %v1439 = vpop.f32.mrf.mxu0
        %v1440 = vadd.f32 0.0, %v1439
        %1441 = vdwg.mxu0
        %1442 = vmatpush.bf16.msra.mxu0 %v1132
        %1443 = vmatpush.bf16.msra.mxu0 %v1112
        %1444 = vmatpush.bf16.msra.mxu0 %v1092
        %1445 = vmatpush.bf16.msra.mxu0 %v1072
        %1446 = vmatpush.bf16.msra.mxu0 %v1052
        %1447 = vmatpush.bf16.msra.mxu0 %v1032
        %1448 = vmatpush.bf16.msra.mxu0 %v1012
        %1449 = vmatpush.bf16.msra.mxu0 %v992
        %1450 = vmatmul.bf16.gmra.mxu0 %v341
        %v1451 = vpop.f32.mrf.mxu0
        %v1452 = vadd.f32 0.0, %v1451
        %v1453 = vpop.f32.mrf.mxu0
        %v1454 = vadd.f32 0.0, %v1453
        %1455 = vdwg.mxu0
        %1456 = vmatpush.bf16.msra.mxu0 %v1133
        %1457 = vmatpush.bf16.msra.mxu0 %v1113
        %1458 = vmatpush.bf16.msra.mxu0 %v1093
        %1459 = vmatpush.bf16.msra.mxu0 %v1073
        %1460 = vmatpush.bf16.msra.mxu0 %v1053
        %1461 = vmatpush.bf16.msra.mxu0 %v1033
        %1462 = vmatpush.bf16.msra.mxu0 %v1013
        %1463 = vmatpush.bf16.msra.mxu0 %v993
        %1464 = vmatmul.bf16.gmra.mxu0 %v341
        %v1465 = vpop.f32.mrf.mxu0
        %v1466 = vadd.f32 0.0, %v1465
        %v1467 = vpop.f32.mrf.mxu0
        %v1468 = vadd.f32 0.0, %v1467
        %1469 = vdwg.mxu0
        %1470 = vmatpush.bf16.msra.mxu0 %v1134
        %1471 = vmatpush.bf16.msra.mxu0 %v1114
        %1472 = vmatpush.bf16.msra.mxu0 %v1094
        %1473 = vmatpush.bf16.msra.mxu0 %v1074
        %1474 = vmatpush.bf16.msra.mxu0 %v1054
        %1475 = vmatpush.bf16.msra.mxu0 %v1034
        %1476 = vmatpush.bf16.msra.mxu0 %v1014
        %1477 = vmatpush.bf16.msra.mxu0 %v994
        %1478 = vmatmul.bf16.gmra.mxu0 %v341
        %v1479 = vpop.f32.mrf.mxu0
        %v1480 = vadd.f32 0.0, %v1479
        %v1481 = vpop.f32.mrf.mxu0
        %v1482 = vadd.f32 0.0, %v1481
        %1483 = vdwg.mxu0
        %1484 = vmatpush.bf16.msra.mxu0 %v1135
        %1485 = vmatpush.bf16.msra.mxu0 %v1115
        %1486 = vmatpush.bf16.msra.mxu0 %v1095
        %1487 = vmatpush.bf16.msra.mxu0 %v1075
        %1488 = vmatpush.bf16.msra.mxu0 %v1055
        %1489 = vmatpush.bf16.msra.mxu0 %v1035
        %1490 = vmatpush.bf16.msra.mxu0 %v1015
        %1491 = vmatpush.bf16.msra.mxu0 %v995
        %1492 = vmatmul.bf16.gmra.mxu0 %v341
        %v1493 = vpop.f32.mrf.mxu0
        %v1494 = vadd.f32 0.0, %v1493
        %v1495 = vpop.f32.mrf.mxu0
        %v1496 = vadd.f32 0.0, %v1495
        %1497 = vdwg.mxu0
        %1498 = vmatpush.bf16.msra.mxu0 %v1136
        %1499 = vmatpush.bf16.msra.mxu0 %v1116
        %1500 = vmatpush.bf16.msra.mxu0 %v1096
        %1501 = vmatpush.bf16.msra.mxu0 %v1076
        %1502 = vmatpush.bf16.msra.mxu0 %v1056
        %1503 = vmatpush.bf16.msra.mxu0 %v1036
        %1504 = vmatpush.bf16.msra.mxu0 %v1016
        %1505 = vmatpush.bf16.msra.mxu0 %v996
        %1506 = vmatmul.bf16.gmra.mxu0 %v341
        %v1507 = vpop.f32.mrf.mxu0
        %v1508 = vadd.f32 0.0, %v1507
        %v1509 = vpop.f32.mrf.mxu0
        %v1510 = vadd.f32 0.0, %v1509
        %1511 = vdwg.mxu0
        %1512 = vmatpush.bf16.msra.mxu0 %v1137
        %1513 = vmatpush.bf16.msra.mxu0 %v1117
        %1514 = vmatpush.bf16.msra.mxu0 %v1097
        %1515 = vmatpush.bf16.msra.mxu0 %v1077
        %1516 = vmatpush.bf16.msra.mxu0 %v1057
        %1517 = vmatpush.bf16.msra.mxu0 %v1037
        %1518 = vmatpush.bf16.msra.mxu0 %v1017
        %1519 = vmatpush.bf16.msra.mxu0 %v997
        %1520 = vmatmul.bf16.gmra.mxu0 %v341
        %v1521 = vpop.f32.mrf.mxu0
        %v1522 = vadd.f32 0.0, %v1521
        %v1523 = vpop.f32.mrf.mxu0
        %v1524 = vadd.f32 0.0, %v1523
        %1525 = vdwg.mxu0
        %1526 = vmatpush.bf16.msra.mxu0 %v1138
        %1527 = vmatpush.bf16.msra.mxu0 %v1118
        %1528 = vmatpush.bf16.msra.mxu0 %v1098
        %1529 = vmatpush.bf16.msra.mxu0 %v1078
        %1530 = vmatpush.bf16.msra.mxu0 %v1058
        %1531 = vmatpush.bf16.msra.mxu0 %v1038
        %1532 = vmatpush.bf16.msra.mxu0 %v1018
        %1533 = vmatpush.bf16.msra.mxu0 %v998
        %1534 = vmatmul.bf16.gmra.mxu0 %v341
        %v1535 = vpop.f32.mrf.mxu0
        %v1536 = vadd.f32 0.0, %v1535
        %v1537 = vpop.f32.mrf.mxu0
        %v1538 = vadd.f32 0.0, %v1537
        %1539 = vdwg.mxu0
        %1540 = vmatpush.bf16.msra.mxu0 %v1139
        %1541 = vmatpush.bf16.msra.mxu0 %v1119
        %1542 = vmatpush.bf16.msra.mxu0 %v1099
        %1543 = vmatpush.bf16.msra.mxu0 %v1079
        %1544 = vmatpush.bf16.msra.mxu0 %v1059
        %1545 = vmatpush.bf16.msra.mxu0 %v1039
        %1546 = vmatpush.bf16.msra.mxu0 %v1019
        %1547 = vmatpush.bf16.msra.mxu0 %v999
        %1548 = vmatmul.bf16.gmra.mxu0 %v341
        %v1549 = vpop.f32.mrf.mxu0
        %v1550 = vadd.f32 0.0, %v1549
        %v1551 = vpop.f32.mrf.mxu0
        %v1552 = vadd.f32 0.0, %v1551
        %1553 = vdwg.mxu0
        %1554 = vmatpush.bf16.msra.mxu0 %v1140
        %1555 = vmatpush.bf16.msra.mxu0 %v1120
        %1556 = vmatpush.bf16.msra.mxu0 %v1100
        %1557 = vmatpush.bf16.msra.mxu0 %v1080
        %1558 = vmatpush.bf16.msra.mxu0 %v1060
        %1559 = vmatpush.bf16.msra.mxu0 %v1040
        %1560 = vmatpush.bf16.msra.mxu0 %v1020
        %1561 = vmatpush.bf16.msra.mxu0 %v1000
        %1562 = vmatmul.bf16.gmra.mxu0 %v341
        %v1563 = vpop.f32.mrf.mxu0
        %v1564 = vadd.f32 0.0, %v1563
        %v1565 = vpop.f32.mrf.mxu0
        %v1566 = vadd.f32 0.0, %v1565
        %1567 = vdwg.mxu0
        %1568 = vmatpush.bf16.msra.mxu0 %v1141
        %1569 = vmatpush.bf16.msra.mxu0 %v1121
        %1570 = vmatpush.bf16.msra.mxu0 %v1101
        %1571 = vmatpush.bf16.msra.mxu0 %v1081
        %1572 = vmatpush.bf16.msra.mxu0 %v1061
        %1573 = vmatpush.bf16.msra.mxu0 %v1041
        %1574 = vmatpush.bf16.msra.mxu0 %v1021
        %1575 = vmatpush.bf16.msra.mxu0 %v1001
        %1576 = vmatmul.bf16.gmra.mxu0 %v341
        %v1577 = vpop.f32.mrf.mxu0
        %v1578 = vadd.f32 0.0, %v1577
        %v1579 = vpop.f32.mrf.mxu0
        %v1580 = vadd.f32 0.0, %v1579
        %1581 = vdwg.mxu0
        %v1582 = vld [vmem:[#allocation7] sm:$0xff]
        %v1583 = vld [vmem:[#allocation7 + $0x8] sm:$0xff]
        %v1584 = vld [vmem:[#allocation8] sm:$0xff]
        %v1585 = vld [vmem:[#allocation8 + $0x8] sm:$0xff]
        %v1586 = vlaneseq
        %v1587 = vshrl.u32 %v1586, 7
        %v1588 = vadd.s32 %v1587, 8
        %v1589 = vlaneseq
        %v1590 = vand.u32 %v1589, 127
        %vm1591 = vcmp.le.s32.totalorder %v1590, %v1587
        %vm1592 = vcmp.le.s32.totalorder %v1590, %v1588
        %v1593 = vmul.f32 %v1312, %v1582
        %v1594 = vmul.f32 %v1314, %v1583
        %v1595 = vmul.f32 %v1326, %v1584
        %v1596 = vmul.f32 %v1328, %v1585
        %v1597 = vadd.f32 %v1593, %v1595
        %v1598 = vadd.f32 %v1594, %v1596
        %v1599 = vmul.f32 %v1597, 0.088388346
        %v1600 = vmul.f32 %v1598, 0.088388346
        %v1601 = vmul.f32 %v1340, %v1582
        %v1602 = vmul.f32 %v1342, %v1583
        %v1603 = vmul.f32 %v1354, %v1584
        %v1604 = vmul.f32 %v1356, %v1585
        %v1605 = vadd.f32 %v1601, %v1603
        %v1606 = vadd.f32 %v1602, %v1604
        %v1607 = vpack.c.bf16 %v1600, %v1599
        %v1608 = vpack.c.bf16 %v1606, %v1605
        %1609 = vmatpush.bf16.xpose.msra.mxu0 0
        %1610 = vmatpush.bf16.xpose.msra.mxu0 0
        %1611 = vmatpush.bf16.xpose.msra.mxu0 0
        %1612 = vmatpush.bf16.xpose.msra.mxu0 0
        %1613 = vmatpush.bf16.xpose.msra.mxu0 0
        %1614 = vmatpush.bf16.xpose.msra.mxu0 0
        %1615 = vmatpush.bf16.xpose.msra.mxu0 0
        %1616 = vmatpush.bf16.xpose.msra.mxu0 %v1608
        %1617 = vmatmul.bf16.gmra.mxu0 %v1607
        %v1618 = vpop.f32.mrf.mxu0
        %v1619 = vadd.f32 0.0, %v1618
        %v1620 = vpop.f32.mrf.mxu0
        %v1621 = vadd.f32 0.0, %v1620
        %1622 = vdwg.mxu0
        %v1623 = vsel %vm1591, %v1619, -1e+30
        %v1624 = vsel %vm1592, %v1621, -1e+30
        %vm1625 = vcmask 130048
        %v1626 = vsel %vm1625, %v1623, -inf
        %1627 = vmax.xlane.f32.xlu0 %v1626
        %v1628 = vpop.xlane.xlu0 %1627
        %v1629 = vsel %vm1625, %v1624, -inf
        %1630 = vmax.xlane.f32.xlu0 %v1629
        %v1631 = vpop.xlane.xlu0 %1630
        %v1632 = vsub.f32 %v1623, %v1628
        %v1633 = vsub.f32 %v1624, %v1631
        %v1634 = vmul.f32 %v1632, 1.442695
        %v1635 = vpow.pop %v1634
        %v1636 = vmul.f32 %v1633, 1.442695
        %v1637 = vpow.pop %v1636
        %v1638 = vsel %vm1625, %v1635, 0.0
        %1639 = vadd.xlane.f32.xlu0 %v1638
        %v1640 = vpop.xlane.xlu0 %1639
        %v1641 = vsel %vm1625, %v1637, 0.0
        %1642 = vadd.xlane.f32.xlu0 %v1641
        %v1643 = vpop.xlane.xlu0 %1642
        %v1644 = vrcp.pop %v1640
        %v1645 = vrcp.pop %v1643
        %v1646 = vmul.f32 %v1635, %v1644
        %v1647 = vmul.f32 %v1637, %v1645
        %v1648 = vpack.c.bf16 %v1647, %v1646
        %v1649 = vpack.c.bf16 %v1370, %v1368
        %v1651 = vsel %vm1625, %v1648, 0
        %1653 = vmatpush.bf16.msra.mxu0 0
        %1654 = vmatpush.bf16.msra.mxu0 0
        %1655 = vmatpush.bf16.msra.mxu0 0
        %1656 = vmatpush.bf16.msra.mxu0 0
        %1657 = vmatpush.bf16.msra.mxu0 0
        %1658 = vmatpush.bf16.msra.mxu0 0
        %1659 = vmatpush.bf16.msra.mxu0 0
        %1660 = vmatpush.bf16.msra.mxu0 %v1649
        %1661 = vmatmul.bf16.gmra.mxu0 %v1651
        %v1662 = vpop.f32.mrf.mxu0
        %v1663 = vadd.f32 0.0, %v1662
        %v1664 = vpop.f32.mrf.mxu0
        %v1665 = vadd.f32 0.0, %v1664
        %1666 = vdwg.mxu0
        %v1667 = vpack.c.bf16 %v1665, %v1663
        %v1668 = vld [vmem:[#allocation10] sm:$0xf]
        %v1669 = vld [vmem:[#allocation10 + $0x4] sm:$0xf]
        %v1670 = vld [vmem:[#allocation10 + $0x8] sm:$0xf]
        %v1671 = vld [vmem:[#allocation10 + $0xc] sm:$0xf]
        %v1672 = vld [vmem:[#allocation10 + $0x10] sm:$0xf]
        %v1673 = vld [vmem:[#allocation10 + $0x14] sm:$0xf]
        %v1674 = vld [vmem:[#allocation10 + $0x18] sm:$0xf]
        %v1675 = vld [vmem:[#allocation10 + $0x1c] sm:$0xf]
        %v1676 = vld [vmem:[#allocation10 + $0x20] sm:$0xf]
        %v1677 = vld [vmem:[#allocation10 + $0x24] sm:$0xf]
        %v1678 = vld [vmem:[#allocation10 + $0x28] sm:$0xf]
        %v1679 = vld [vmem:[#allocation10 + $0x2c] sm:$0xf]
        %v1680 = vld [vmem:[#allocation10 + $0x30] sm:$0xf]
        %v1681 = vld [vmem:[#allocation10 + $0x34] sm:$0xf]
        %v1682 = vld [vmem:[#allocation10 + $0x38] sm:$0xf]
        %v1683 = vld [vmem:[#allocation10 + $0x3c] sm:$0xf]
        %v1684 = vmul.f32 %v1382, %v1582
        %v1685 = vmul.f32 %v1384, %v1583
        %v1686 = vmul.f32 %v1396, %v1584
        %v1687 = vmul.f32 %v1398, %v1585
        %v1688 = vadd.f32 %v1684, %v1686
        %v1689 = vadd.f32 %v1685, %v1687
        %v1690 = vmul.f32 %v1688, 0.088388346
        %v1691 = vmul.f32 %v1689, 0.088388346
        %v1692 = vmul.f32 %v1410, %v1582
        %v1693 = vmul.f32 %v1412, %v1583
        %v1694 = vmul.f32 %v1424, %v1584
        %v1695 = vmul.f32 %v1426, %v1585
        %v1696 = vadd.f32 %v1692, %v1694
        %v1697 = vadd.f32 %v1693, %v1695
        %v1698 = vpack.c.bf16 %v1691, %v1690
        %v1699 = vpack.c.bf16 %v1697, %v1696
        %1700 = vmatpush.bf16.xpose.msra.mxu0 0
        %1701 = vmatpush.bf16.xpose.msra.mxu0 0
        %1702 = vmatpush.bf16.xpose.msra.mxu0 0
        %1703 = vmatpush.bf16.xpose.msra.mxu0 0
        %1704 = vmatpush.bf16.xpose.msra.mxu0 0
        %1705 = vmatpush.bf16.xpose.msra.mxu0 0
        %1706 = vmatpush.bf16.xpose.msra.mxu0 0
        %1707 = vmatpush.bf16.xpose.msra.mxu0 %v1699
        %1708 = vmatmul.bf16.gmra.mxu0 %v1698
        %v1709 = vpop.f32.mrf.mxu0
        %v1710 = vadd.f32 0.0, %v1709
        %v1711 = vpop.f32.mrf.mxu0
        %v1712 = vadd.f32 0.0, %v1711
        %1713 = vdwg.mxu0
        %v1714 = vsel %vm1591, %v1710, -1e+30
        %v1715 = vsel %vm1592, %v1712, -1e+30
        %v1716 = vsel %vm1625, %v1714, -inf
        %1717 = vmax.xlane.f32.xlu0 %v1716
        %v1718 = vpop.xlane.xlu0 %1717
        %v1719 = vsel %vm1625, %v1715, -inf
        %1720 = vmax.xlane.f32.xlu0 %v1719
        %v1721 = vpop.xlane.xlu0 %1720
        %v1722 = vsub.f32 %v1714, %v1718
        %v1723 = vsub.f32 %v1715, %v1721
        %v1724 = vmul.f32 %v1722, 1.442695
        %v1725 = vpow.pop %v1724
        %v1726 = vmul.f32 %v1723, 1.442695
        %v1727 = vpow.pop %v1726
        %v1728 = vsel %vm1625, %v1725, 0.0
        %1729 = vadd.xlane.f32.xlu0 %v1728
        %v1730 = vpop.xlane.xlu0 %1729
        %v1731 = vsel %vm1625, %v1727, 0.0
        %1732 = vadd.xlane.f32.xlu0 %v1731
        %v1733 = vpop.xlane.xlu0 %1732
        %v1734 = vrcp.pop %v1730
        %v1735 = vrcp.pop %v1733
        %v1736 = vmul.f32 %v1725, %v1734
        %v1737 = vmul.f32 %v1727, %v1735
        %v1738 = vpack.c.bf16 %v1737, %v1736
        %v1739 = vpack.c.bf16 %v1440, %v1438
        %v1741 = vsel %vm1625, %v1738, 0
        %1743 = vmatpush.bf16.msra.mxu0 0
        %1744 = vmatpush.bf16.msra.mxu0 0
        %1745 = vmatpush.bf16.msra.mxu0 0
        %1746 = vmatpush.bf16.msra.mxu0 0
        %1747 = vmatpush.bf16.msra.mxu0 0
        %1748 = vmatpush.bf16.msra.mxu0 0
        %1749 = vmatpush.bf16.msra.mxu0 0
        %1750 = vmatpush.bf16.msra.mxu0 %v1739
        %1751 = vmatmul.bf16.gmra.mxu0 %v1741
        %v1752 = vpop.f32.mrf.mxu0
        %v1753 = vadd.f32 0.0, %v1752
        %v1754 = vpop.f32.mrf.mxu0
        %v1755 = vadd.f32 0.0, %v1754
        %1756 = vdwg.mxu0
        %v1757 = vpack.c.bf16 %v1755, %v1753
        %v1758 = vld [vmem:[#allocation10 + $0x40] sm:$0xf]
        %v1759 = vld [vmem:[#allocation10 + $0x44] sm:$0xf]
        %v1760 = vld [vmem:[#allocation10 + $0x48] sm:$0xf]
        %v1761 = vld [vmem:[#allocation10 + $0x4c] sm:$0xf]
        %v1762 = vld [vmem:[#allocation10 + $0x50] sm:$0xf]
        %v1763 = vld [vmem:[#allocation10 + $0x54] sm:$0xf]
        %v1764 = vld [vmem:[#allocation10 + $0x58] sm:$0xf]
        %v1765 = vld [vmem:[#allocation10 + $0x5c] sm:$0xf]
        %v1766 = vld [vmem:[#allocation10 + $0x60] sm:$0xf]
        %v1767 = vld [vmem:[#allocation10 + $0x64] sm:$0xf]
        %v1768 = vld [vmem:[#allocation10 + $0x68] sm:$0xf]
        %v1769 = vld [vmem:[#allocation10 + $0x6c] sm:$0xf]
        %v1770 = vld [vmem:[#allocation10 + $0x70] sm:$0xf]
        %v1771 = vld [vmem:[#allocation10 + $0x74] sm:$0xf]
        %v1772 = vld [vmem:[#allocation10 + $0x78] sm:$0xf]
        %v1773 = vld [vmem:[#allocation10 + $0x7c] sm:$0xf]
        %v1790 = vunpack.c.l.b16 %v1758
        %v1791 = vunpack.c.l.b16 %v1759
        %v1792 = vunpack.c.l.b16 %v1760
        %v1793 = vunpack.c.l.b16 %v1761
        %v1794 = vunpack.c.l.b16 %v1762
        %v1795 = vunpack.c.l.b16 %v1763
        %v1796 = vunpack.c.l.b16 %v1764
        %v1797 = vunpack.c.l.b16 %v1765
        %v1798 = vunpack.c.l.b16 %v1766
        %v1799 = vunpack.c.l.b16 %v1767
        %v1800 = vunpack.c.l.b16 %v1768
        %v1801 = vunpack.c.l.b16 %v1769
        %v1802 = vunpack.c.l.b16 %v1770
        %v1803 = vunpack.c.l.b16 %v1771
        %v1804 = vunpack.c.l.b16 %v1772
        %v1805 = vunpack.c.l.b16 %v1773
        %v1806 = vpack.c.b16 %v1791, %v1790
        %v1807 = vpack.c.b16 %v1793, %v1792
        %v1808 = vpack.c.b16 %v1795, %v1794
        %v1809 = vpack.c.b16 %v1797, %v1796
        %v1810 = vpack.c.b16 %v1799, %v1798
        %v1811 = vpack.c.b16 %v1801, %v1800
        %v1812 = vpack.c.b16 %v1803, %v1802
        %v1813 = vpack.c.b16 %v1805, %v1804
        %1822 = vmatpush.bf16.msra.mxu0 %v1813
        %1823 = vmatpush.bf16.msra.mxu0 %v1812
        %1824 = vmatpush.bf16.msra.mxu0 %v1811
        %1825 = vmatpush.bf16.msra.mxu0 %v1810
        %1826 = vmatpush.bf16.msra.mxu0 %v1809
        %1827 = vmatpush.bf16.msra.mxu0 %v1808
        %1828 = vmatpush.bf16.msra.mxu0 %v1807
        %1829 = vmatpush.bf16.msra.mxu0 %v1806
        %1830 = vmatmul.bf16.gmra.mxu0 %v1757
        %v1831 = vpop.f32.mrf.mxu0
        %v1832 = vadd.f32 0.0, %v1831
        %v1833 = vpop.f32.mrf.mxu0
        %v1834 = vadd.f32 0.0, %v1833
        %1835 = vdwg.mxu0
        %v1852 = vunpack.c.l.b16 %v1668
        %v1853 = vunpack.c.l.b16 %v1669
        %v1854 = vunpack.c.l.b16 %v1670
        %v1855 = vunpack.c.l.b16 %v1671
        %v1856 = vunpack.c.l.b16 %v1672
        %v1857 = vunpack.c.l.b16 %v1673
        %v1858 = vunpack.c.l.b16 %v1674
        %v1859 = vunpack.c.l.b16 %v1675
        %v1860 = vunpack.c.l.b16 %v1676
        %v1861 = vunpack.c.l.b16 %v1677
        %v1862 = vunpack.c.l.b16 %v1678
        %v1863 = vunpack.c.l.b16 %v1679
        %v1864 = vunpack.c.l.b16 %v1680
        %v1865 = vunpack.c.l.b16 %v1681
        %v1866 = vunpack.c.l.b16 %v1682
        %v1867 = vunpack.c.l.b16 %v1683
        %v1868 = vpack.c.b16 %v1853, %v1852
        %v1869 = vpack.c.b16 %v1855, %v1854
        %v1870 = vpack.c.b16 %v1857, %v1856
        %v1871 = vpack.c.b16 %v1859, %v1858
        %v1872 = vpack.c.b16 %v1861, %v1860
        %v1873 = vpack.c.b16 %v1863, %v1862
        %v1874 = vpack.c.b16 %v1865, %v1864
        %v1875 = vpack.c.b16 %v1867, %v1866
        %1884 = vmatpush.bf16.msra.mxu0 %v1875
        %1885 = vmatpush.bf16.msra.mxu0 %v1874
        %1886 = vmatpush.bf16.msra.mxu0 %v1873
        %1887 = vmatpush.bf16.msra.mxu0 %v1872
        %1888 = vmatpush.bf16.msra.mxu0 %v1871
        %1889 = vmatpush.bf16.msra.mxu0 %v1870
        %1890 = vmatpush.bf16.msra.mxu0 %v1869
        %1891 = vmatpush.bf16.msra.mxu0 %v1868
        %1892 = vmatmul.bf16.gmra.mxu0 %v1667
        %v1893 = vpop.f32.mrf.mxu0
        %v1894 = vadd.f32 %v1832, %v1893
        %v1895 = vpop.f32.mrf.mxu0
        %v1896 = vadd.f32 %v1834, %v1895
        %1897 = vdwg.mxu0
        %v1898 = vmul.f32 %v1452, %v1582
        %v1899 = vmul.f32 %v1454, %v1583
        %v1900 = vmul.f32 %v1466, %v1584
        %v1901 = vmul.f32 %v1468, %v1585
        %v1902 = vadd.f32 %v1898, %v1900
        %v1903 = vadd.f32 %v1899, %v1901
        %v1904 = vmul.f32 %v1902, 0.088388346
        %v1905 = vmul.f32 %v1903, 0.088388346
        %v1906 = vmul.f32 %v1480, %v1582
        %v1907 = vmul.f32 %v1482, %v1583
        %v1908 = vmul.f32 %v1494, %v1584
        %v1909 = vmul.f32 %v1496, %v1585
        %v1910 = vadd.f32 %v1906, %v1908
        %v1911 = vadd.f32 %v1907, %v1909
        %v1912 = vpack.c.bf16 %v1905, %v1904
        %v1913 = vpack.c.bf16 %v1911, %v1910
        %1914 = vmatpush.bf16.xpose.msra.mxu0 0
        %1915 = vmatpush.bf16.xpose.msra.mxu0 0
        %1916 = vmatpush.bf16.xpose.msra.mxu0 0
        %1917 = vmatpush.bf16.xpose.msra.mxu0 0
        %1918 = vmatpush.bf16.xpose.msra.mxu0 0
        %1919 = vmatpush.bf16.xpose.msra.mxu0 0
        %1920 = vmatpush.bf16.xpose.msra.mxu0 0
        %1921 = vmatpush.bf16.xpose.msra.mxu0 %v1913
        %1922 = vmatmul.bf16.gmra.mxu0 %v1912
        %v1923 = vpop.f32.mrf.mxu0
        %v1924 = vadd.f32 0.0, %v1923
        %v1925 = vpop.f32.mrf.mxu0
        %v1926 = vadd.f32 0.0, %v1925
        %1927 = vdwg.mxu0
        %v1928 = vsel %vm1591, %v1924, -1e+30
        %v1929 = vsel %vm1592, %v1926, -1e+30
        %v1930 = vsel %vm1625, %v1928, -inf
        %1931 = vmax.xlane.f32.xlu0 %v1930
        %v1932 = vpop.xlane.xlu0 %1931
        %v1933 = vsel %vm1625, %v1929, -inf
        %1934 = vmax.xlane.f32.xlu0 %v1933
        %v1935 = vpop.xlane.xlu0 %1934
        %v1936 = vsub.f32 %v1928, %v1932
        %v1937 = vsub.f32 %v1929, %v1935
        %v1938 = vmul.f32 %v1936, 1.442695
        %v1939 = vpow.pop %v1938
        %v1940 = vmul.f32 %v1937, 1.442695
        %v1941 = vpow.pop %v1940
        %v1942 = vsel %vm1625, %v1939, 0.0
        %1943 = vadd.xlane.f32.xlu0 %v1942
        %v1944 = vpop.xlane.xlu0 %1943
        %v1945 = vsel %vm1625, %v1941, 0.0
        %1946 = vadd.xlane.f32.xlu0 %v1945
        %v1947 = vpop.xlane.xlu0 %1946
        %v1948 = vrcp.pop %v1944
        %v1949 = vrcp.pop %v1947
        %v1950 = vmul.f32 %v1939, %v1948
        %v1951 = vmul.f32 %v1941, %v1949
        %v1952 = vpack.c.bf16 %v1951, %v1950
        %v1953 = vpack.c.bf16 %v1510, %v1508
        %v1955 = vsel %vm1625, %v1952, 0
        %1957 = vmatpush.bf16.msra.mxu0 0
        %1958 = vmatpush.bf16.msra.mxu0 0
        %1959 = vmatpush.bf16.msra.mxu0 0
        %1960 = vmatpush.bf16.msra.mxu0 0
        %1961 = vmatpush.bf16.msra.mxu0 0
        %1962 = vmatpush.bf16.msra.mxu0 0
        %1963 = vmatpush.bf16.msra.mxu0 0
        %1964 = vmatpush.bf16.msra.mxu0 %v1953
        %1965 = vmatmul.bf16.gmra.mxu0 %v1955
        %v1966 = vpop.f32.mrf.mxu0
        %v1967 = vadd.f32 0.0, %v1966
        %v1968 = vpop.f32.mrf.mxu0
        %v1969 = vadd.f32 0.0, %v1968
        %1970 = vdwg.mxu0
        %v1971 = vpack.c.bf16 %v1969, %v1967
        %v1972 = vld [vmem:[#allocation10 + $0x80] sm:$0xf]
        %v1973 = vld [vmem:[#allocation10 + $0x84] sm:$0xf]
        %v1974 = vld [vmem:[#allocation10 + $0x88] sm:$0xf]
        %v1975 = vld [vmem:[#allocation10 + $0x8c] sm:$0xf]
        %v1976 = vld [vmem:[#allocation10 + $0x90] sm:$0xf]
        %v1977 = vld [vmem:[#allocation10 + $0x94] sm:$0xf]
        %v1978 = vld [vmem:[#allocation10 + $0x98] sm:$0xf]
        %v1979 = vld [vmem:[#allocation10 + $0x9c] sm:$0xf]
        %v1980 = vld [vmem:[#allocation10 + $0xa0] sm:$0xf]
        %v1981 = vld [vmem:[#allocation10 + $0xa4] sm:$0xf]
        %v1982 = vld [vmem:[#allocation10 + $0xa8] sm:$0xf]
        %v1983 = vld [vmem:[#allocation10 + $0xac] sm:$0xf]
        %v1984 = vld [vmem:[#allocation10 + $0xb0] sm:$0xf]
        %v1985 = vld [vmem:[#allocation10 + $0xb4] sm:$0xf]
        %v1986 = vld [vmem:[#allocation10 + $0xb8] sm:$0xf]
        %v1987 = vld [vmem:[#allocation10 + $0xbc] sm:$0xf]
        %v2004 = vunpack.c.l.b16 %v1972
        %v2005 = vunpack.c.l.b16 %v1973
        %v2006 = vunpack.c.l.b16 %v1974
        %v2007 = vunpack.c.l.b16 %v1975
        %v2008 = vunpack.c.l.b16 %v1976
        %v2009 = vunpack.c.l.b16 %v1977
        %v2010 = vunpack.c.l.b16 %v1978
        %v2011 = vunpack.c.l.b16 %v1979
        %v2012 = vunpack.c.l.b16 %v1980
        %v2013 = vunpack.c.l.b16 %v1981
        %v2014 = vunpack.c.l.b16 %v1982
        %v2015 = vunpack.c.l.b16 %v1983
        %v2016 = vunpack.c.l.b16 %v1984
        %v2017 = vunpack.c.l.b16 %v1985
        %v2018 = vunpack.c.l.b16 %v1986
        %v2019 = vunpack.c.l.b16 %v1987
        %v2020 = vpack.c.b16 %v2005, %v2004
        %v2021 = vpack.c.b16 %v2007, %v2006
        %v2022 = vpack.c.b16 %v2009, %v2008
        %v2023 = vpack.c.b16 %v2011, %v2010
        %v2024 = vpack.c.b16 %v2013, %v2012
        %v2025 = vpack.c.b16 %v2015, %v2014
        %v2026 = vpack.c.b16 %v2017, %v2016
        %v2027 = vpack.c.b16 %v2019, %v2018
        %2036 = vmatpush.bf16.msra.mxu0 %v2027
        %2037 = vmatpush.bf16.msra.mxu0 %v2026
        %2038 = vmatpush.bf16.msra.mxu0 %v2025
        %2039 = vmatpush.bf16.msra.mxu0 %v2024
        %2040 = vmatpush.bf16.msra.mxu0 %v2023
        %2041 = vmatpush.bf16.msra.mxu0 %v2022
        %2042 = vmatpush.bf16.msra.mxu0 %v2021
        %2043 = vmatpush.bf16.msra.mxu0 %v2020
        %2044 = vmatmul.bf16.gmra.mxu0 %v1971
        %v2045 = vpop.f32.mrf.mxu0
        %v2046 = vadd.f32 0.0, %v2045
        %v2047 = vpop.f32.mrf.mxu0
        %v2048 = vadd.f32 0.0, %v2047
        %2049 = vdwg.mxu0
        %v2050 = vadd.f32 %v1894, %v2046
        %v2051 = vadd.f32 %v1896, %v2048
        %v2052 = vmul.f32 %v1522, %v1582
        %v2053 = vmul.f32 %v1524, %v1583
        %v2054 = vmul.f32 %v1536, %v1584
        %v2055 = vmul.f32 %v1538, %v1585
        %v2056 = vadd.f32 %v2052, %v2054
        %v2057 = vadd.f32 %v2053, %v2055
        %v2058 = vmul.f32 %v2056, 0.088388346
        %v2059 = vmul.f32 %v2057, 0.088388346
        %v2060 = vmul.f32 %v1550, %v1582
        %v2061 = vmul.f32 %v1552, %v1583
        %v2062 = vmul.f32 %v1564, %v1584
        %v2063 = vmul.f32 %v1566, %v1585
        %v2064 = vadd.f32 %v2060, %v2062
        %v2065 = vadd.f32 %v2061, %v2063
        %v2066 = vpack.c.bf16 %v2059, %v2058
        %v2067 = vpack.c.bf16 %v2065, %v2064
        %2068 = vmatpush.bf16.xpose.msra.mxu0 0
        %2069 = vmatpush.bf16.xpose.msra.mxu0 0
        %2070 = vmatpush.bf16.xpose.msra.mxu0 0
        %2071 = vmatpush.bf16.xpose.msra.mxu0 0
        %2072 = vmatpush.bf16.xpose.msra.mxu0 0
        %2073 = vmatpush.bf16.xpose.msra.mxu0 0
        %2074 = vmatpush.bf16.xpose.msra.mxu0 0
        %2075 = vmatpush.bf16.xpose.msra.mxu0 %v2067
        %2076 = vmatmul.bf16.gmra.mxu0 %v2066
        %v2077 = vpop.f32.mrf.mxu0
        %v2078 = vadd.f32 0.0, %v2077
        %v2079 = vpop.f32.mrf.mxu0
        %v2080 = vadd.f32 0.0, %v2079
        %2081 = vdwg.mxu0
        %v2082 = vsel %vm1591, %v2078, -1e+30
        %v2083 = vsel %vm1592, %v2080, -1e+30
        %v2084 = vsel %vm1625, %v2082, -inf
        %2085 = vmax.xlane.f32.xlu0 %v2084
        %v2086 = vpop.xlane.xlu0 %2085
        %v2087 = vsel %vm1625, %v2083, -inf
        %2088 = vmax.xlane.f32.xlu0 %v2087
        %v2089 = vpop.xlane.xlu0 %2088
        %v2090 = vsub.f32 %v2082, %v2086
        %v2091 = vsub.f32 %v2083, %v2089
        %v2092 = vmul.f32 %v2090, 1.442695
        %v2093 = vpow.pop %v2092
        %v2094 = vmul.f32 %v2091, 1.442695
        %v2095 = vpow.pop %v2094
        %v2096 = vsel %vm1625, %v2093, 0.0
        %2097 = vadd.xlane.f32.xlu0 %v2096
        %v2098 = vpop.xlane.xlu0 %2097
        %v2099 = vsel %vm1625, %v2095, 0.0
        %2100 = vadd.xlane.f32.xlu0 %v2099
        %v2101 = vpop.xlane.xlu0 %2100
        %v2102 = vrcp.pop %v2098
        %v2103 = vrcp.pop %v2101
        %v2104 = vmul.f32 %v2093, %v2102
        %v2105 = vmul.f32 %v2095, %v2103
        %v2106 = vpack.c.bf16 %v2105, %v2104
        %v2107 = vpack.c.bf16 %v1580, %v1578
        %v2109 = vsel %vm1625, %v2106, 0
        %2111 = vmatpush.bf16.msra.mxu0 0
        %2112 = vmatpush.bf16.msra.mxu0 0
        %2113 = vmatpush.bf16.msra.mxu0 0
        %2114 = vmatpush.bf16.msra.mxu0 0
        %2115 = vmatpush.bf16.msra.mxu0 0
        %2116 = vmatpush.bf16.msra.mxu0 0
        %2117 = vmatpush.bf16.msra.mxu0 0
        %2118 = vmatpush.bf16.msra.mxu0 %v2107
        %2119 = vmatmul.bf16.gmra.mxu0 %v2109
        %v2120 = vpop.f32.mrf.mxu0
        %v2121 = vadd.f32 0.0, %v2120
        %v2122 = vpop.f32.mrf.mxu0
        %v2123 = vadd.f32 0.0, %v2122
        %2124 = vdwg.mxu0
        %v2125 = vpack.c.bf16 %v2123, %v2121
        %v2126 = vld [vmem:[#allocation10 + $0xc0] sm:$0xf]
        %v2127 = vld [vmem:[#allocation10 + $0xc4] sm:$0xf]
        %v2128 = vld [vmem:[#allocation10 + $0xc8] sm:$0xf]
        %v2129 = vld [vmem:[#allocation10 + $0xcc] sm:$0xf]
        %v2130 = vld [vmem:[#allocation10 + $0xd0] sm:$0xf]
        %v2131 = vld [vmem:[#allocation10 + $0xd4] sm:$0xf]
        %v2132 = vld [vmem:[#allocation10 + $0xd8] sm:$0xf]
        %v2133 = vld [vmem:[#allocation10 + $0xdc] sm:$0xf]
        %v2134 = vld [vmem:[#allocation10 + $0xe0] sm:$0xf]
        %v2135 = vld [vmem:[#allocation10 + $0xe4] sm:$0xf]
        %v2136 = vld [vmem:[#allocation10 + $0xe8] sm:$0xf]
        %v2137 = vld [vmem:[#allocation10 + $0xec] sm:$0xf]
        %v2138 = vld [vmem:[#allocation10 + $0xf0] sm:$0xf]
        %v2139 = vld [vmem:[#allocation10 + $0xf4] sm:$0xf]
        %v2140 = vld [vmem:[#allocation10 + $0xf8] sm:$0xf]
        %v2141 = vld [vmem:[#allocation10 + $0xfc] sm:$0xf]
        %v2158 = vunpack.c.l.b16 %v2126
        %v2159 = vunpack.c.l.b16 %v2127
        %v2160 = vunpack.c.l.b16 %v2128
        %v2161 = vunpack.c.l.b16 %v2129
        %v2162 = vunpack.c.l.b16 %v2130
        %v2163 = vunpack.c.l.b16 %v2131
        %v2164 = vunpack.c.l.b16 %v2132
        %v2165 = vunpack.c.l.b16 %v2133
        %v2166 = vunpack.c.l.b16 %v2134
        %v2167 = vunpack.c.l.b16 %v2135
        %v2168 = vunpack.c.l.b16 %v2136
        %v2169 = vunpack.c.l.b16 %v2137
        %v2170 = vunpack.c.l.b16 %v2138
        %v2171 = vunpack.c.l.b16 %v2139
        %v2172 = vunpack.c.l.b16 %v2140
        %v2173 = vunpack.c.l.b16 %v2141
        %v2174 = vpack.c.b16 %v2159, %v2158
        %v2175 = vpack.c.b16 %v2161, %v2160
        %v2176 = vpack.c.b16 %v2163, %v2162
        %v2177 = vpack.c.b16 %v2165, %v2164
        %v2178 = vpack.c.b16 %v2167, %v2166
        %v2179 = vpack.c.b16 %v2169, %v2168
        %v2180 = vpack.c.b16 %v2171, %v2170
        %v2181 = vpack.c.b16 %v2173, %v2172
        %2190 = vmatpush.bf16.msra.mxu0 %v2181
        %2191 = vmatpush.bf16.msra.mxu0 %v2180
        %2192 = vmatpush.bf16.msra.mxu0 %v2179
        %2193 = vmatpush.bf16.msra.mxu0 %v2178
        %2194 = vmatpush.bf16.msra.mxu0 %v2177
        %2195 = vmatpush.bf16.msra.mxu0 %v2176
        %2196 = vmatpush.bf16.msra.mxu0 %v2175
        %2197 = vmatpush.bf16.msra.mxu0 %v2174
        %2198 = vmatmul.bf16.gmra.mxu0 %v2125
        %v2199 = vpop.f32.mrf.mxu0
        %v2200 = vadd.f32 0.0, %v2199
        %v2201 = vpop.f32.mrf.mxu0
        %v2202 = vadd.f32 0.0, %v2201
        %2203 = vdwg.mxu0
        %v2204 = vadd.f32 %v2050, %v2200
        %v2205 = vadd.f32 %v2051, %v2202
        %v2206 = vld [vmem:[%s5] sm:$0x1]
        %v2208 = vperm.slane %v2206, 0
        %v2210 = vadd.f32 %v2204, %v2208
        %v2211 = vadd.f32 %v2205, %v2208
        %2212 = vst [vmem:[%s337] sm:$0xff] %v2210
        %2213 = vst [vmem:[%s337 + $0x8] sm:$0xff] %v2211
        %s2214 = sand.u32 %s164, 1
        %s2215 = scalar_lea.sflag [#allocation4], %s2214
        %s2216 = sand.u32 %s164, 1
        %s2217 = smul.addr %s2216, 16
        %s2218 = scalar_lea.vmem [#allocation11], %s2217
        // Predicated region
        $region65: #{tpu_custom_call.1} parent=43 // pred_check
          %p2219 = pneg %p174
        $region66: #{tpu_custom_call.1} parent=43 // pred_check_branch
          %2221 = sbr.rel (%p2219) target = $region68
        $region67: #{tpu_custom_call.1} parent=43 // pred_region
          %2223 = vsyncadd %s2215, 0
          %s2224 = smul.addr %s25, 2
          %s2225 = smul.addr %s2224, 8
          %s2226 = scalar_lea.hbm %s6, %s2225
          %s2227 = sshll.u32 %s2218, 4
          %s2228 = int_to_ptr.vmem [resolvable:$true] %s2227
          %s2229 = sshll.u32 %s2226, 4
          %s2230 = int_to_ptr.hbm [resolvable:$true] %s2229
          %2235 = dma.vmem_to_hbm [thread:$0]  %s2228, 256, %s2230, %s2215, 128, 128, 8
        $region68: #{tpu_custom_call.1} parent=43 // pred_fallthru
          _
      $region44: #{tpu_custom_call.1} parent=5 // pred_fallthru
        _
      %p2236 = scmp.le.s32.totalorder 2, %s20
      // Predicated region
      $region69: #{tpu_custom_call.1} parent=5 // pred_check
        %p2237 = pneg %p2236
      $region70: #{tpu_custom_call.1} parent=5 // pred_check_branch
        %2239 = sbr.rel (%p2237) target = $region72
      $region71: #{tpu_custom_call.1} parent=5 // pred_region
        %s2240 = ssub.s32 %s20, 2
        // Predicated region
        $region73: #{tpu_custom_call.1} parent=71 // pred_check
          %p2241 = pneg %p180
        $region74: #{tpu_custom_call.1} parent=71 // pred_check_branch
          %2243 = sbr.rel (%p2241) target = $region76
        $region75: #{tpu_custom_call.1} parent=71 // pred_region
          %s2244 = sand.u32 %s165, 1
          %s2245 = scalar_lea.sflag [#allocation4], %s2244
          %s2246 = sand.u32 %s165, 1
          %s2247 = smul.addr %s2246, 16
          %s2248 = scalar_lea.vmem [#allocation11], %s2247
          %2250 = dma.done %s2245, 256
        $region76: #{tpu_custom_call.1} parent=71 // pred_fallthru
          _
      $region72: #{tpu_custom_call.1} parent=5 // pred_fallthru
        _
    $region6: #{tpu_custom_call.1} parent=1 // loop_footer
      %s24 = sadd.s32 1, %s20
    $region7: #{tpu_custom_call.1} parent=1 // loop_footer_branch
      %19 = sbr.rel target = $region3
    $region8: #{tpu_custom_call.1} parent=1 // loop_exit
      _
    %2251 = vsyncpa [#allocation3], 1
    %s2252 = scalar_lea.sflag [#allocation3], 1
    %2253 = vsyncpa %s2252, 1
    %2254 = vsyncpa [#allocation6], 1
    %2255 = vsyncpa [#allocation9], 1
    %2256 = vsyncpa [#allocation4], 1
    %s2257 = scalar_lea.sflag [#allocation4], 1
    %2258 = vsyncpa %s2257, 1

</llo_original>
